<compile_context>
chip_gen: v7x
topology: tpu7x:2x2x1
jax: 0.10.0
libtpu: 0.0.40
codegen_flags: <defaults>
</compile_context>

<pallas_src>
import math
import numpy as np
import jax
import jax.numpy as jnp
from jax.experimental import pallas as pl
from jax.experimental.pallas import tpu as pltpu

_C1 = 0.01 ** 2
_C2 = 0.03 ** 2


def _gaussian_1d(window_size: int, sigma: float) -> np.ndarray:
    # Matches torch `gaussian(window_size, sigma)` (then normalized).
    g = np.array(
        [math.exp(-((x - window_size // 2) ** 2) / (2.0 * sigma ** 2))
         for x in range(window_size)],
        dtype=np.float64)
    return g / g.sum()


def _blur_matrix(n: int, window_size: int, g: np.ndarray) -> np.ndarray:
    """Banded Gaussian blur matrix with replicate padding folded in.

    M[i, k] = sum_j g[j] * [clamp(i - pad + j, 0, n-1) == k]
    so that (M @ x) along an axis reproduces F.pad(x, 'replicate') followed by
    a valid 1D Gaussian convolution along that axis.
    """
    pad = window_size // 2
    m = np.zeros((n, n), dtype=np.float64)
    for i in range(n):
        for j in range(window_size):
            k = min(max(i - pad + j, 0), n - 1)
            m[i, k] += g[j]
    return m.astype(np.float32)


def _pick_block_batch(nc: int, h: int) -> int:
    """Images per grid step: keep 5*B*H at a few hundred rows, grid >= 2."""
    cap = max(1, 256 // max(h, 1))
    if nc >= 2:
        cap = min(cap, max(1, nc // 2))   # keep >= 2 steps for v7x megacore
    best = 1
    for d in range(1, nc + 1):
        if nc % d == 0 and d <= cap:
            best = d
    return best


def _ssim_kernel(gh_ref, gw_ref, im1_ref, im2_ref,
                 mu1_ref, mu2_ref, s1_ref, s2_ref, ssim_ref):
    B, H, W = im1_ref.shape
    gh = gh_ref[...]          # (H, H)  vertical blur (left-multiply)
    gw = gw_ref[...]          # (W, W)  horizontal blur (right-multiply, pre-transposed)
    x1 = im1_ref[...]         # (B, H, W) float32
    x2 = im2_ref[...]

    # Five blur inputs for all B images, stacked along the major axis.
    stack = jnp.concatenate([x1, x2, x1 * x1, x2 * x2, x1 * x2], axis=0)  # (5B, H, W)

    # Horizontal pass: one MXU matmul for the whole stack (large M dim).
    t = jnp.dot(stack.reshape(5 * B * H, W), gw,
                preferred_element_type=jnp.float32).reshape(5 * B, H, W)

    # Vertical pass: per-slab MXU matmul (static, unrolled; 5*B small matmuls).
    blur = [jnp.dot(gh, t[s], preferred_element_type=jnp.float32)
            for s in range(5 * B)]

    def group(q):  # regroup quantity q over its B images -> (B, H, W)
        return jnp.stack(blur[q * B:(q + 1) * B], axis=0)

    mu1, mu2, e11, e22, e12 = [group(q) for q in range(5)]

    mu1_sq = mu1 * mu1
    mu2_sq = mu2 * mu2
    mu1_mu2 = mu1 * mu2
    sigma1_sq = e11 - mu1_sq
    sigma2_sq = e22 - mu2_sq
    sigma12 = e12 - mu1_mu2

    num = (2.0 * mu1_mu2 + _C1) * (2.0 * sigma12 + _C2)
    den = (mu1_sq + mu2_sq + _C1) * (sigma1_sq + sigma2_sq + _C2)
    ssim_map = num / den

    mu1_ref[...] = mu1
    mu2_ref[...] = mu2
    s1_ref[...] = sigma1_sq
    s2_ref[...] = sigma2_sq
    ssim_ref[...] = ssim_map


def ssim_forward(im1, im2, window_size: int = 11, sigma: float = 1.5):
    """Pallas equivalent of SSIM.forward.  im1, im2: (N, C, H, W) float."""
    assert im1.shape == im2.shape, f"{im1.shape} and {im2.shape} are not same!"
    N, C, H, W = im1.shape
    NC = N * C

    g = _gaussian_1d(window_size, sigma)
    gh = jnp.asarray(_blur_matrix(H, window_size, g))        # (H, H)
    gw = jnp.asarray(_blur_matrix(W, window_size, g).T)      # (W, W), right-multiply

    x1 = im1.astype(jnp.float32).reshape(NC, H, W)
    x2 = im2.astype(jnp.float32).reshape(NC, H, W)

    B = _pick_block_batch(NC, H)
    grid = NC // B

    img_spec = pl.BlockSpec((B, H, W), lambda i: (i, 0, 0))
    mat_h_spec = pl.BlockSpec((H, H), lambda i: (0, 0))
    mat_w_spec = pl.BlockSpec((W, W), lambda i: (0, 0))
    out_sds = jax.ShapeDtypeStruct((NC, H, W), jnp.float32)

    mu1, mu2, s1, s2, ssim_map = pl.pallas_call(
        _ssim_kernel,
        out_shape=(out_sds,) * 5,
        grid_spec=pltpu.PrefetchScalarGridSpec(
            num_scalar_prefetch=0,
            grid=(grid,),
            in_specs=[mat_h_spec, mat_w_spec, img_spec, img_spec],
            out_specs=[img_spec] * 5,
        ),
        compiler_params=pltpu.CompilerParams(
            dimension_semantics=("parallel",),
            vmem_limit_bytes=64 * 1024 * 1024),
    )(gh, gw, x1, x2)

    def unflat(a):
        return a.reshape(N, C, H, W)

    return {
        "mu1": unflat(mu1),
        "mu2": unflat(mu2),
        "sigma1_sq": unflat(s1),
        "sigma2_sq": unflat(s2),
        "ssim": unflat(ssim_map),
    }


if __name__ == "__main__":
    key = jax.random.PRNGKey(0)
    k1, k2 = jax.random.split(key)
    N, C, H, W = 2, 4, 16, 16
    im1 = jax.random.uniform(k1, (N, C, H, W), dtype=jnp.float32)
    im2 = jax.random.uniform(k2, (N, C, H, W), dtype=jnp.float32)

    out = ssim_forward(im1, im2, window_size=11, sigma=1.5)
    jax.block_until_ready(out)

    # Shapes match the PyTorch module's output dict.
    for k in ("mu1", "mu2", "sigma1_sq", "sigma2_sq", "ssim"):
        assert out[k].shape == (N, C, H, W), (k, out[k].shape)

    # Numerical check against a float64 NumPy reference of the same math
    # (replicate padding + grouped Gaussian conv).
    g64 = _gaussian_1d(11, 1.5)
    Mh = _blur_matrix(H, 11, g64).astype(np.float64)
    Mw = _blur_matrix(W, 11, g64).astype(np.float64)
    a1 = np.asarray(im1, dtype=np.float64).reshape(N * C, H, W)
    a2 = np.asarray(im2, dtype=np.float64).reshape(N * C, H, W)

    def blur_np(v):
        return np.einsum("ik,bkl,jl->bij", Mh, v, Mw)

    m1 = blur_np(a1)
    m2 = blur_np(a2)
    v1 = blur_np(a1 * a1) - m1 ** 2
    v2 = blur_np(a2 * a2) - m2 ** 2
    v12 = blur_np(a1 * a2) - m1 * m2
    ref = ((2.0 * m1 * m2 + _C1) * (2.0 * v12 + _C2)) / (
        (m1 ** 2 + m2 ** 2 + _C1) * (v1 + v2 + _C2))

    np.testing.assert_allclose(
        np.asarray(out["ssim"]).reshape(N * C, H, W), ref, rtol=1e-3, atol=1e-3)

    print("KERNEL_OK")
</pallas_src>

<mosaic_0001>
module attributes {stable_mosaic.version = 11 : i64} {
  func.func @_ssim_kernel(%arg0: i32, %arg1: memref<16x16xf32, #tpu.memory_space<vmem>>, %arg2: memref<16x16xf32, #tpu.memory_space<vmem>>, %arg3: memref<4x16x16xf32, #tpu.memory_space<vmem>>, %arg4: memref<4x16x16xf32, #tpu.memory_space<vmem>>, %arg5: memref<4x16x16xf32, #tpu.memory_space<vmem>>, %arg6: memref<4x16x16xf32, #tpu.memory_space<vmem>>, %arg7: memref<4x16x16xf32, #tpu.memory_space<vmem>>, %arg8: memref<4x16x16xf32, #tpu.memory_space<vmem>>, %arg9: memref<4x16x16xf32, #tpu.memory_space<vmem>>) attributes {dimension_semantics = [#tpu.dimension_semantics<parallel>], iteration_bounds = array<i64: 2>, scalar_prefetch = 0 : i64, scratch_operands = 0 : i64, tpu.core_type = #tpu.core_type<tc>, window_params = [{pipeline_mode = #tpu.pipeline_mode<synchronous>, transform_indices = @transform_0, window_bounds = array<i64: 16, 16>}, {pipeline_mode = #tpu.pipeline_mode<synchronous>, transform_indices = @transform_1, window_bounds = array<i64: 16, 16>}, {transform_indices = @transform_2, window_bounds = array<i64: 4, 16, 16>}, {transform_indices = @transform_3, window_bounds = array<i64: 4, 16, 16>}, {transform_indices = @transform_4, window_bounds = array<i64: 4, 16, 16>}, {transform_indices = @transform_5, window_bounds = array<i64: 4, 16, 16>}, {transform_indices = @transform_6, window_bounds = array<i64: 4, 16, 16>}, {transform_indices = @transform_7, window_bounds = array<i64: 4, 16, 16>}, {transform_indices = @transform_8, window_bounds = array<i64: 4, 16, 16>}]} {
    %c0 = arith.constant 0 : index
    %c0_0 = arith.constant 0 : index
    %0 = vector.load %arg1[%c0, %c0_0] : memref<16x16xf32, #tpu.memory_space<vmem>>, vector<16x16xf32>
    %c0_1 = arith.constant 0 : index
    %c0_2 = arith.constant 0 : index
    %1 = vector.load %arg2[%c0_1, %c0_2] : memref<16x16xf32, #tpu.memory_space<vmem>>, vector<16x16xf32>
    %c0_3 = arith.constant 0 : index
    %c0_4 = arith.constant 0 : index
    %c0_5 = arith.constant 0 : index
    %2 = vector.load %arg3[%c0_3, %c0_4, %c0_5] : memref<4x16x16xf32, #tpu.memory_space<vmem>>, vector<4x16x16xf32>
    %c0_6 = arith.constant 0 : index
    %c0_7 = arith.constant 0 : index
    %c0_8 = arith.constant 0 : index
    %3 = vector.load %arg4[%c0_6, %c0_7, %c0_8] : memref<4x16x16xf32, #tpu.memory_space<vmem>>, vector<4x16x16xf32>
    %4 = arith.mulf %2, %2 : vector<4x16x16xf32>
    %5 = arith.mulf %3, %3 : vector<4x16x16xf32>
    %6 = arith.mulf %2, %3 : vector<4x16x16xf32>
    %7 = tpu.concatenate %2, %3, %4, %5, %6 in 0 : vector<4x16x16xf32>, vector<4x16x16xf32>, vector<4x16x16xf32>, vector<4x16x16xf32>, vector<4x16x16xf32> -> vector<20x16x16xf32>
    %8 = vector.shape_cast %7 : vector<20x16x16xf32> to vector<320x16xf32>
    %cst = arith.constant dense<0.000000e+00> : vector<320x16xf32>
    %9 = tpu.matmul %8, %1, %cst {dimension_numbers = #tpu.dot_dimension_numbers<[1], [0], [0], [1], [0, 0, 1, 1], [], []>} : vector<320x16xf32>, vector<16x16xf32>, vector<320x16xf32> -> vector<320x16xf32>
    %10 = vector.shape_cast %9 : vector<320x16xf32> to vector<20x16x16xf32>
    %11 = vector.extract_strided_slice %10 {offsets = [0, 0, 0], sizes = [1, 16, 16], strides = [1, 1, 1]} : vector<20x16x16xf32> to vector<1x16x16xf32>
    %12 = vector.shape_cast %11 : vector<1x16x16xf32> to vector<16x16xf32>
    %cst_9 = arith.constant dense<0.000000e+00> : vector<16x16xf32>
    %13 = tpu.matmul %0, %12, %cst_9 {dimension_numbers = #tpu.dot_dimension_numbers<[1], [0], [0], [1], [0, 0, 1, 1], [], []>} : vector<16x16xf32>, vector<16x16xf32>, vector<16x16xf32> -> vector<16x16xf32>
    %14 = vector.extract_strided_slice %10 {offsets = [1, 0, 0], sizes = [1, 16, 16], strides = [1, 1, 1]} : vector<20x16x16xf32> to vector<1x16x16xf32>
    %15 = vector.shape_cast %14 : vector<1x16x16xf32> to vector<16x16xf32>
    %cst_10 = arith.constant dense<0.000000e+00> : vector<16x16xf32>
    %16 = tpu.matmul %0, %15, %cst_10 {dimension_numbers = #tpu.dot_dimension_numbers<[1], [0], [0], [1], [0, 0, 1, 1], [], []>} : vector<16x16xf32>, vector<16x16xf32>, vector<16x16xf32> -> vector<16x16xf32>
    %17 = vector.extract_strided_slice %10 {offsets = [2, 0, 0], sizes = [1, 16, 16], strides = [1, 1, 1]} : vector<20x16x16xf32> to vector<1x16x16xf32>
    %18 = vector.shape_cast %17 : vector<1x16x16xf32> to vector<16x16xf32>
    %cst_11 = arith.constant dense<0.000000e+00> : vector<16x16xf32>
    %19 = tpu.matmul %0, %18, %cst_11 {dimension_numbers = #tpu.dot_dimension_numbers<[1], [0], [0], [1], [0, 0, 1, 1], [], []>} : vector<16x16xf32>, vector<16x16xf32>, vector<16x16xf32> -> vector<16x16xf32>
    %20 = vector.extract_strided_slice %10 {offsets = [3, 0, 0], sizes = [1, 16, 16], strides = [1, 1, 1]} : vector<20x16x16xf32> to vector<1x16x16xf32>
    %21 = vector.shape_cast %20 : vector<1x16x16xf32> to vector<16x16xf32>
    %cst_12 = arith.constant dense<0.000000e+00> : vector<16x16xf32>
    %22 = tpu.matmul %0, %21, %cst_12 {dimension_numbers = #tpu.dot_dimension_numbers<[1], [0], [0], [1], [0, 0, 1, 1], [], []>} : vector<16x16xf32>, vector<16x16xf32>, vector<16x16xf32> -> vector<16x16xf32>
    %23 = vector.extract_strided_slice %10 {offsets = [4, 0, 0], sizes = [1, 16, 16], strides = [1, 1, 1]} : vector<20x16x16xf32> to vector<1x16x16xf32>
    %24 = vector.shape_cast %23 : vector<1x16x16xf32> to vector<16x16xf32>
    %cst_13 = arith.constant dense<0.000000e+00> : vector<16x16xf32>
    %25 = tpu.matmul %0, %24, %cst_13 {dimension_numbers = #tpu.dot_dimension_numbers<[1], [0], [0], [1], [0, 0, 1, 1], [], []>} : vector<16x16xf32>, vector<16x16xf32>, vector<16x16xf32> -> vector<16x16xf32>
    %26 = vector.extract_strided_slice %10 {offsets = [5, 0, 0], sizes = [1, 16, 16], strides = [1, 1, 1]} : vector<20x16x16xf32> to vector<1x16x16xf32>
    %27 = vector.shape_cast %26 : vector<1x16x16xf32> to vector<16x16xf32>
    %cst_14 = arith.constant dense<0.000000e+00> : vector<16x16xf32>
    %28 = tpu.matmul %0, %27, %cst_14 {dimension_numbers = #tpu.dot_dimension_numbers<[1], [0], [0], [1], [0, 0, 1, 1], [], []>} : vector<16x16xf32>, vector<16x16xf32>, vector<16x16xf32> -> vector<16x16xf32>
    %29 = vector.extract_strided_slice %10 {offsets = [6, 0, 0], sizes = [1, 16, 16], strides = [1, 1, 1]} : vector<20x16x16xf32> to vector<1x16x16xf32>
    %30 = vector.shape_cast %29 : vector<1x16x16xf32> to vector<16x16xf32>
    %cst_15 = arith.constant dense<0.000000e+00> : vector<16x16xf32>
    %31 = tpu.matmul %0, %30, %cst_15 {dimension_numbers = #tpu.dot_dimension_numbers<[1], [0], [0], [1], [0, 0, 1, 1], [], []>} : vector<16x16xf32>, vector<16x16xf32>, vector<16x16xf32> -> vector<16x16xf32>
    %32 = vector.extract_strided_slice %10 {offsets = [7, 0, 0], sizes = [1, 16, 16], strides = [1, 1, 1]} : vector<20x16x16xf32> to vector<1x16x16xf32>
    %33 = vector.shape_cast %32 : vector<1x16x16xf32> to vector<16x16xf32>
    %cst_16 = arith.constant dense<0.000000e+00> : vector<16x16xf32>
    %34 = tpu.matmul %0, %33, %cst_16 {dimension_numbers = #tpu.dot_dimension_numbers<[1], [0], [0], [1], [0, 0, 1, 1], [], []>} : vector<16x16xf32>, vector<16x16xf32>, vector<16x16xf32> -> vector<16x16xf32>
    %35 = vector.extract_strided_slice %10 {offsets = [8, 0, 0], sizes = [1, 16, 16], strides = [1, 1, 1]} : vector<20x16x16xf32> to vector<1x16x16xf32>
    %36 = vector.shape_cast %35 : vector<1x16x16xf32> to vector<16x16xf32>
    %cst_17 = arith.constant dense<0.000000e+00> : vector<16x16xf32>
    %37 = tpu.matmul %0, %36, %cst_17 {dimension_numbers = #tpu.dot_dimension_numbers<[1], [0], [0], [1], [0, 0, 1, 1], [], []>} : vector<16x16xf32>, vector<16x16xf32>, vector<16x16xf32> -> vector<16x16xf32>
    %38 = vector.extract_strided_slice %10 {offsets = [9, 0, 0], sizes = [1, 16, 16], strides = [1, 1, 1]} : vector<20x16x16xf32> to vector<1x16x16xf32>
    %39 = vector.shape_cast %38 : vector<1x16x16xf32> to vector<16x16xf32>
    %cst_18 = arith.constant dense<0.000000e+00> : vector<16x16xf32>
    %40 = tpu.matmul %0, %39, %cst_18 {dimension_numbers = #tpu.dot_dimension_numbers<[1], [0], [0], [1], [0, 0, 1, 1], [], []>} : vector<16x16xf32>, vector<16x16xf32>, vector<16x16xf32> -> vector<16x16xf32>
    %41 = vector.extract_strided_slice %10 {offsets = [10, 0, 0], sizes = [1, 16, 16], strides = [1, 1, 1]} : vector<20x16x16xf32> to vector<1x16x16xf32>
    %42 = vector.shape_cast %41 : vector<1x16x16xf32> to vector<16x16xf32>
    %cst_19 = arith.constant dense<0.000000e+00> : vector<16x16xf32>
    %43 = tpu.matmul %0, %42, %cst_19 {dimension_numbers = #tpu.dot_dimension_numbers<[1], [0], [0], [1], [0, 0, 1, 1], [], []>} : vector<16x16xf32>, vector<16x16xf32>, vector<16x16xf32> -> vector<16x16xf32>
    %44 = vector.extract_strided_slice %10 {offsets = [11, 0, 0], sizes = [1, 16, 16], strides = [1, 1, 1]} : vector<20x16x16xf32> to vector<1x16x16xf32>
    %45 = vector.shape_cast %44 : vector<1x16x16xf32> to vector<16x16xf32>
    %cst_20 = arith.constant dense<0.000000e+00> : vector<16x16xf32>
    %46 = tpu.matmul %0, %45, %cst_20 {dimension_numbers = #tpu.dot_dimension_numbers<[1], [0], [0], [1], [0, 0, 1, 1], [], []>} : vector<16x16xf32>, vector<16x16xf32>, vector<16x16xf32> -> vector<16x16xf32>
    %47 = vector.extract_strided_slice %10 {offsets = [12, 0, 0], sizes = [1, 16, 16], strides = [1, 1, 1]} : vector<20x16x16xf32> to vector<1x16x16xf32>
    %48 = vector.shape_cast %47 : vector<1x16x16xf32> to vector<16x16xf32>
    %cst_21 = arith.constant dense<0.000000e+00> : vector<16x16xf32>
    %49 = tpu.matmul %0, %48, %cst_21 {dimension_numbers = #tpu.dot_dimension_numbers<[1], [0], [0], [1], [0, 0, 1, 1], [], []>} : vector<16x16xf32>, vector<16x16xf32>, vector<16x16xf32> -> vector<16x16xf32>
    %50 = vector.extract_strided_slice %10 {offsets = [13, 0, 0], sizes = [1, 16, 16], strides = [1, 1, 1]} : vector<20x16x16xf32> to vector<1x16x16xf32>
    %51 = vector.shape_cast %50 : vector<1x16x16xf32> to vector<16x16xf32>
    %cst_22 = arith.constant dense<0.000000e+00> : vector<16x16xf32>
    %52 = tpu.matmul %0, %51, %cst_22 {dimension_numbers = #tpu.dot_dimension_numbers<[1], [0], [0], [1], [0, 0, 1, 1], [], []>} : vector<16x16xf32>, vector<16x16xf32>, vector<16x16xf32> -> vector<16x16xf32>
    %53 = vector.extract_strided_slice %10 {offsets = [14, 0, 0], sizes = [1, 16, 16], strides = [1, 1, 1]} : vector<20x16x16xf32> to vector<1x16x16xf32>
    %54 = vector.shape_cast %53 : vector<1x16x16xf32> to vector<16x16xf32>
    %cst_23 = arith.constant dense<0.000000e+00> : vector<16x16xf32>
    %55 = tpu.matmul %0, %54, %cst_23 {dimension_numbers = #tpu.dot_dimension_numbers<[1], [0], [0], [1], [0, 0, 1, 1], [], []>} : vector<16x16xf32>, vector<16x16xf32>, vector<16x16xf32> -> vector<16x16xf32>
    %56 = vector.extract_strided_slice %10 {offsets = [15, 0, 0], sizes = [1, 16, 16], strides = [1, 1, 1]} : vector<20x16x16xf32> to vector<1x16x16xf32>
    %57 = vector.shape_cast %56 : vector<1x16x16xf32> to vector<16x16xf32>
    %cst_24 = arith.constant dense<0.000000e+00> : vector<16x16xf32>
    %58 = tpu.matmul %0, %57, %cst_24 {dimension_numbers = #tpu.dot_dimension_numbers<[1], [0], [0], [1], [0, 0, 1, 1], [], []>} : vector<16x16xf32>, vector<16x16xf32>, vector<16x16xf32> -> vector<16x16xf32>
    %59 = vector.extract_strided_slice %10 {offsets = [16, 0, 0], sizes = [1, 16, 16], strides = [1, 1, 1]} : vector<20x16x16xf32> to vector<1x16x16xf32>
    %60 = vector.shape_cast %59 : vector<1x16x16xf32> to vector<16x16xf32>
    %cst_25 = arith.constant dense<0.000000e+00> : vector<16x16xf32>
    %61 = tpu.matmul %0, %60, %cst_25 {dimension_numbers = #tpu.dot_dimension_numbers<[1], [0], [0], [1], [0, 0, 1, 1], [], []>} : vector<16x16xf32>, vector<16x16xf32>, vector<16x16xf32> -> vector<16x16xf32>
    %62 = vector.extract_strided_slice %10 {offsets = [17, 0, 0], sizes = [1, 16, 16], strides = [1, 1, 1]} : vector<20x16x16xf32> to vector<1x16x16xf32>
    %63 = vector.shape_cast %62 : vector<1x16x16xf32> to vector<16x16xf32>
    %cst_26 = arith.constant dense<0.000000e+00> : vector<16x16xf32>
    %64 = tpu.matmul %0, %63, %cst_26 {dimension_numbers = #tpu.dot_dimension_numbers<[1], [0], [0], [1], [0, 0, 1, 1], [], []>} : vector<16x16xf32>, vector<16x16xf32>, vector<16x16xf32> -> vector<16x16xf32>
    %65 = vector.extract_strided_slice %10 {offsets = [18, 0, 0], sizes = [1, 16, 16], strides = [1, 1, 1]} : vector<20x16x16xf32> to vector<1x16x16xf32>
    %66 = vector.shape_cast %65 : vector<1x16x16xf32> to vector<16x16xf32>
    %cst_27 = arith.constant dense<0.000000e+00> : vector<16x16xf32>
    %67 = tpu.matmul %0, %66, %cst_27 {dimension_numbers = #tpu.dot_dimension_numbers<[1], [0], [0], [1], [0, 0, 1, 1], [], []>} : vector<16x16xf32>, vector<16x16xf32>, vector<16x16xf32> -> vector<16x16xf32>
    %68 = vector.extract_strided_slice %10 {offsets = [19, 0, 0], sizes = [1, 16, 16], strides = [1, 1, 1]} : vector<20x16x16xf32> to vector<1x16x16xf32>
    %69 = vector.shape_cast %68 : vector<1x16x16xf32> to vector<16x16xf32>
    %cst_28 = arith.constant dense<0.000000e+00> : vector<16x16xf32>
    %70 = tpu.matmul %0, %69, %cst_28 {dimension_numbers = #tpu.dot_dimension_numbers<[1], [0], [0], [1], [0, 0, 1, 1], [], []>} : vector<16x16xf32>, vector<16x16xf32>, vector<16x16xf32> -> vector<16x16xf32>
    %71 = vector.shape_cast %13 : vector<16x16xf32> to vector<1x16x16xf32>
    %72 = vector.shape_cast %16 : vector<16x16xf32> to vector<1x16x16xf32>
    %73 = vector.shape_cast %19 : vector<16x16xf32> to vector<1x16x16xf32>
    %74 = vector.shape_cast %22 : vector<16x16xf32> to vector<1x16x16xf32>
    %75 = tpu.concatenate %71, %72, %73, %74 in 0 : vector<1x16x16xf32>, vector<1x16x16xf32>, vector<1x16x16xf32>, vector<1x16x16xf32> -> vector<4x16x16xf32>
    %76 = vector.shape_cast %25 : vector<16x16xf32> to vector<1x16x16xf32>
    %77 = vector.shape_cast %28 : vector<16x16xf32> to vector<1x16x16xf32>
    %78 = vector.shape_cast %31 : vector<16x16xf32> to vector<1x16x16xf32>
    %79 = vector.shape_cast %34 : vector<16x16xf32> to vector<1x16x16xf32>
    %80 = tpu.concatenate %76, %77, %78, %79 in 0 : vector<1x16x16xf32>, vector<1x16x16xf32>, vector<1x16x16xf32>, vector<1x16x16xf32> -> vector<4x16x16xf32>
    %81 = vector.shape_cast %37 : vector<16x16xf32> to vector<1x16x16xf32>
    %82 = vector.shape_cast %40 : vector<16x16xf32> to vector<1x16x16xf32>
    %83 = vector.shape_cast %43 : vector<16x16xf32> to vector<1x16x16xf32>
    %84 = vector.shape_cast %46 : vector<16x16xf32> to vector<1x16x16xf32>
    %85 = tpu.concatenate %81, %82, %83, %84 in 0 : vector<1x16x16xf32>, vector<1x16x16xf32>, vector<1x16x16xf32>, vector<1x16x16xf32> -> vector<4x16x16xf32>
    %86 = vector.shape_cast %49 : vector<16x16xf32> to vector<1x16x16xf32>
    %87 = vector.shape_cast %52 : vector<16x16xf32> to vector<1x16x16xf32>
    %88 = vector.shape_cast %55 : vector<16x16xf32> to vector<1x16x16xf32>
    %89 = vector.shape_cast %58 : vector<16x16xf32> to vector<1x16x16xf32>
    %90 = tpu.concatenate %86, %87, %88, %89 in 0 : vector<1x16x16xf32>, vector<1x16x16xf32>, vector<1x16x16xf32>, vector<1x16x16xf32> -> vector<4x16x16xf32>
    %91 = vector.shape_cast %61 : vector<16x16xf32> to vector<1x16x16xf32>
    %92 = vector.shape_cast %64 : vector<16x16xf32> to vector<1x16x16xf32>
    %93 = vector.shape_cast %67 : vector<16x16xf32> to vector<1x16x16xf32>
    %94 = vector.shape_cast %70 : vector<16x16xf32> to vector<1x16x16xf32>
    %95 = tpu.concatenate %91, %92, %93, %94 in 0 : vector<1x16x16xf32>, vector<1x16x16xf32>, vector<1x16x16xf32>, vector<1x16x16xf32> -> vector<4x16x16xf32>
    %96 = arith.mulf %75, %75 : vector<4x16x16xf32>
    %97 = arith.mulf %80, %80 : vector<4x16x16xf32>
    %98 = arith.mulf %75, %80 : vector<4x16x16xf32>
    %99 = arith.subf %85, %96 : vector<4x16x16xf32>
    %100 = arith.subf %90, %97 : vector<4x16x16xf32>
    %101 = arith.subf %95, %98 : vector<4x16x16xf32>
    %cst_29 = arith.constant 2.000000e+00 : f32
    %102 = vector.broadcast %cst_29 : f32 to vector<4x16x16xf32>
    %103 = arith.mulf %102, %98 : vector<4x16x16xf32>
    %cst_30 = arith.constant 9.99999974E-5 : f32
    %104 = vector.broadcast %cst_30 : f32 to vector<4x16x16xf32>
    %105 = arith.addf %103, %104 : vector<4x16x16xf32>
    %cst_31 = arith.constant 2.000000e+00 : f32
    %106 = vector.broadcast %cst_31 : f32 to vector<4x16x16xf32>
    %107 = arith.mulf %106, %101 : vector<4x16x16xf32>
    %cst_32 = arith.constant 8.99999984E-4 : f32
    %108 = vector.broadcast %cst_32 : f32 to vector<4x16x16xf32>
    %109 = arith.addf %107, %108 : vector<4x16x16xf32>
    %110 = arith.mulf %105, %109 : vector<4x16x16xf32>
    %111 = arith.addf %96, %97 : vector<4x16x16xf32>
    %cst_33 = arith.constant 9.99999974E-5 : f32
    %112 = vector.broadcast %cst_33 : f32 to vector<4x16x16xf32>
    %113 = arith.addf %111, %112 : vector<4x16x16xf32>
    %114 = arith.addf %99, %100 : vector<4x16x16xf32>
    %cst_34 = arith.constant 8.99999984E-4 : f32
    %115 = vector.broadcast %cst_34 : f32 to vector<4x16x16xf32>
    %116 = arith.addf %114, %115 : vector<4x16x16xf32>
    %117 = arith.mulf %113, %116 : vector<4x16x16xf32>
    %118 = arith.divf %110, %117 : vector<4x16x16xf32>
    %c0_35 = arith.constant 0 : index
    %c0_36 = arith.constant 0 : index
    %c0_37 = arith.constant 0 : index
    %119 = vector.load %arg5[%c0_35, %c0_36, %c0_37] : memref<4x16x16xf32, #tpu.memory_space<vmem>>, vector<4x16x16xf32>
    tpu.vector_store %arg5[%c0_35, %c0_36, %c0_37], %75 {strides = array<i32>} : memref<4x16x16xf32, #tpu.memory_space<vmem>>, vector<4x16x16xf32>,
    %c0_38 = arith.constant 0 : index
    %c0_39 = arith.constant 0 : index
    %c0_40 = arith.constant 0 : index
    %120 = vector.load %arg6[%c0_38, %c0_39, %c0_40] : memref<4x16x16xf32, #tpu.memory_space<vmem>>, vector<4x16x16xf32>
    tpu.vector_store %arg6[%c0_38, %c0_39, %c0_40], %80 {strides = array<i32>} : memref<4x16x16xf32, #tpu.memory_space<vmem>>, vector<4x16x16xf32>,
    %c0_41 = arith.constant 0 : index
    %c0_42 = arith.constant 0 : index
    %c0_43 = arith.constant 0 : index
    %121 = vector.load %arg7[%c0_41, %c0_42, %c0_43] : memref<4x16x16xf32, #tpu.memory_space<vmem>>, vector<4x16x16xf32>
    tpu.vector_store %arg7[%c0_41, %c0_42, %c0_43], %99 {strides = array<i32>} : memref<4x16x16xf32, #tpu.memory_space<vmem>>, vector<4x16x16xf32>,
    %c0_44 = arith.constant 0 : index
    %c0_45 = arith.constant 0 : index
    %c0_46 = arith.constant 0 : index
    %122 = vector.load %arg8[%c0_44, %c0_45, %c0_46] : memref<4x16x16xf32, #tpu.memory_space<vmem>>, vector<4x16x16xf32>
    tpu.vector_store %arg8[%c0_44, %c0_45, %c0_46], %100 {strides = array<i32>} : memref<4x16x16xf32, #tpu.memory_space<vmem>>, vector<4x16x16xf32>,
    %c0_47 = arith.constant 0 : index
    %c0_48 = arith.constant 0 : index
    %c0_49 = arith.constant 0 : index
    %123 = vector.load %arg9[%c0_47, %c0_48, %c0_49] : memref<4x16x16xf32, #tpu.memory_space<vmem>>, vector<4x16x16xf32>
    tpu.vector_store %arg9[%c0_47, %c0_48, %c0_49], %118 {strides = array<i32>} : memref<4x16x16xf32, #tpu.memory_space<vmem>>, vector<4x16x16xf32>,
    return
  }
  func.func @transform_0(%arg0: i32) -> (i32, i32) {
    %c0_i32 = arith.constant 0 : i32
    %c0_i32_0 = arith.constant 0 : i32
    %c0_i32_1 = arith.constant 0 : i32
    return %c0_i32, %c0_i32_0 : i32, i32
  }
  func.func @transform_1(%arg0: i32) -> (i32, i32) {
    %c0_i32 = arith.constant 0 : i32
    %c0_i32_0 = arith.constant 0 : i32
    %c0_i32_1 = arith.constant 0 : i32
    return %c0_i32, %c0_i32_0 : i32, i32
  }
  func.func @transform_2(%arg0: i32) -> (i32, i32, i32) {
    %c0_i32 = arith.constant 0 : i32
    %c0_i32_0 = arith.constant 0 : i32
    %c0_i32_1 = arith.constant 0 : i32
    return %arg0, %c0_i32, %c0_i32_0 : i32, i32, i32
  }
  func.func @transform_3(%arg0: i32) -> (i32, i32, i32) {
    %c0_i32 = arith.constant 0 : i32
    %c0_i32_0 = arith.constant 0 : i32
    %c0_i32_1 = arith.constant 0 : i32
    return %arg0, %c0_i32, %c0_i32_0 : i32, i32, i32
  }
  func.func @transform_4(%arg0: i32) -> (i32, i32, i32) {
    %c0_i32 = arith.constant 0 : i32
    %c0_i32_0 = arith.constant 0 : i32
    %c0_i32_1 = arith.constant 0 : i32
    return %arg0, %c0_i32, %c0_i32_0 : i32, i32, i32
  }
  func.func @transform_5(%arg0: i32) -> (i32, i32, i32) {
    %c0_i32 = arith.constant 0 : i32
    %c0_i32_0 = arith.constant 0 : i32
    %c0_i32_1 = arith.constant 0 : i32
    return %arg0, %c0_i32, %c0_i32_0 : i32, i32, i32
  }
  func.func @transform_6(%arg0: i32) -> (i32, i32, i32) {
    %c0_i32 = arith.constant 0 : i32
    %c0_i32_0 = arith.constant 0 : i32
    %c0_i32_1 = arith.constant 0 : i32
    return %arg0, %c0_i32, %c0_i32_0 : i32, i32, i32
  }
  func.func @transform_7(%arg0: i32) -> (i32, i32, i32) {
    %c0_i32 = arith.constant 0 : i32
    %c0_i32_0 = arith.constant 0 : i32
    %c0_i32_1 = arith.constant 0 : i32
    return %arg0, %c0_i32, %c0_i32_0 : i32, i32, i32
  }
  func.func @transform_8(%arg0: i32) -> (i32, i32, i32) {
    %c0_i32 = arith.constant 0 : i32
    %c0_i32_0 = arith.constant 0 : i32
    %c0_i32_1 = arith.constant 0 : i32
    return %arg0, %c0_i32, %c0_i32_0 : i32, i32, i32
  }
}

</mosaic_0001>

<llo_original>
// kernel: tpu_custom_call.1
$region0: #{tpu_custom_call.1}
  #allocation0 [shape = 'u32[]', space=smem, size = 0x4, offset = 0x4, fixed_abs, tag = 'smem constant byte address 0x4 - core index']
  #allocation1 [shape = 'u32[144,128]{1,0:T(1,128)}', space=vmem, size = 0x12000, scoped, tag = 'internal scratch']
  %s0 = inlined_call_operand.hbm [shape: f32[16,16], index: 0, kind: input, shape index: {}]
  %s1 = inlined_call_operand.hbm [shape: f32[16,16], index: 1, kind: input, shape index: {}]
  %s2 = inlined_call_operand.hbm [shape: f32[8,16,16], index: 2, kind: input, shape index: {}]
  %s3 = inlined_call_operand.hbm [shape: f32[8,16,16], index: 3, kind: input, shape index: {}]
  %s4 = inlined_call_operand.hbm [shape: f32[8,16,16], index: 4, kind: output, shape index: {0}]
  %s5 = inlined_call_operand.hbm [shape: f32[8,16,16], index: 5, kind: output, shape index: {1}]
  %s6 = inlined_call_operand.hbm [shape: f32[8,16,16], index: 6, kind: output, shape index: {2}]
  %s7 = inlined_call_operand.hbm [shape: f32[8,16,16], index: 7, kind: output, shape index: {3}]
  %s8 = inlined_call_operand.hbm [shape: f32[8,16,16], index: 8, kind: output, shape index: {4}]
  %9 = xla_tuple %s4, %s5, %s6, %s7, %s8
  %s10 = sld [smem:[#allocation0]]
  $region97: #{tpu_custom_call.1} parent=0
    _
  %s12 = ssub.s32 1, %s10
  %s13 = scalar_select 0, %s12, %s10
  $region1: #{tpu_custom_call.1} parent=0
    #allocation2 [shape = 'u8[8192]{0}', space=vmem, size = 0x2000, scoped, tag = 'input window, operand 0, single buffered']
    #allocation3 [shape = 's32[2]{0}', space=sflag, size = 0x8, scoped, tag = 'scoped memory for tpu_custom_call.1']
    #allocation4 [shape = 's32[2]{0}', space=sflag, size = 0x8, scoped, tag = 'scoped memory for tpu_custom_call.1']
    #allocation5 [shape = 'u8[8192]{0}', space=vmem, size = 0x2000, scoped, tag = 'input window, operand 1, single buffered']
    #allocation6 [shape = 's32[1]{0}', space=sflag, size = 0x4, scoped, tag = 'scoped memory for tpu_custom_call.1']
    #allocation7 [shape = 'u8[65536]{0}', space=vmem, size = 0x10000, scoped, tag = 'input window, operand 2']
    #allocation8 [shape = 'u8[65536]{0}', space=vmem, size = 0x10000, scoped, tag = 'input window, operand 3']
    #allocation9 [shape = 'u8[65536]{0}', space=vmem, size = 0x10000, scoped, tag = 'output window, operand 0']
    #allocation10 [shape = 'u8[65536]{0}', space=vmem, size = 0x10000, scoped, tag = 'output window, operand 1']
    #allocation11 [shape = 's32[2]{0}', space=sflag, size = 0x8, scoped, tag = 'scoped memory for tpu_custom_call.1']
    #allocation12 [shape = 'u8[65536]{0}', space=vmem, size = 0x10000, scoped, tag = 'output window, operand 2']
    #allocation13 [shape = 'u8[65536]{0}', space=vmem, size = 0x10000, scoped, tag = 'output window, operand 3']
    #allocation14 [shape = 's32[2]{0}', space=sflag, size = 0x8, scoped, tag = 'scoped memory for tpu_custom_call.1']
    #allocation15 [shape = 'u8[65536]{0}', space=vmem, size = 0x10000, scoped, tag = 'output window, operand 4']
    %14 = vsyncpa [#allocation3], 0
    %15 = vsyncpa [#allocation6], 0
    %16 = vsyncpa [#allocation4], 0
    %s17 = scalar_lea.sflag [#allocation4], 1
    %18 = vsyncpa %s17, 0
    %19 = vsyncpa [#allocation11], 0
    %s20 = scalar_lea.sflag [#allocation11], 1
    %21 = vsyncpa %s20, 0
    %22 = vsyncpa [#allocation14], 0
    %s23 = scalar_lea.sflag [#allocation14], 1
    %24 = vsyncpa %s23, 0
    loop: start=0, step=1, limit=4
    $region2: #{tpu_custom_call.1} parent=1 // loop_pre_header
      _
    $region3: #{tpu_custom_call.1} parent=1 // loop_header
      %s26 = sphi 0, %s30
      %p27 = scmp.ge.s32.totalorder %s26, 4
      %s34 = sphi 0, %s34
      %s36 = sphi 0, %s34
      %s37 = sphi 0, %s36
      %s51 = sphi 0, %s37
      %s55 = sphi 0, %s55
      %s57 = sphi 0, %s55
      %s58 = sphi 0, %s57
      %s72 = sphi 0, %s58
      %s78 = sphi 0, %s80
      %s81 = sphi 0, %s78
      %s82 = sphi 0, %s81
      %s98 = sphi 0, %s82
      %s104 = sphi 0, %s106
      %s107 = sphi 0, %s104
      %s108 = sphi 0, %s107
      %s124 = sphi 0, %s108
      %s130 = sphi 0, %s132
      %s133 = sphi 0, %s130
      %s134 = sphi 0, %s133
      %s150 = sphi 0, %s134
      %s156 = sphi 0, %s158
      %s159 = sphi 0, %s156
      %s160 = sphi 0, %s159
      %s176 = sphi 0, %s160
      %s182 = sphi 0, %s184
      %s185 = sphi 0, %s182
      %s186 = sphi 0, %s185
      %s202 = sphi 0, %s186
      %s208 = sphi 0, %s210
      %s211 = sphi 0, %s208
      %s212 = sphi 0, %s211
      %s228 = sphi 0, %s212
      %s234 = sphi 0, %s236
      %s237 = sphi 0, %s234
      %s238 = sphi 0, %s237
      %s254 = sphi 0, %s238
    $region4: #{tpu_custom_call.1} parent=1 // loop_header_branch
      %29 = sbr.rel (%p27) target = $region8
    $region5: #{tpu_custom_call.1} parent=1 // loop_body
      %s31 = ssub.s32 %s26, 1
      %s32 = ssub.s32 %s26, 2
      %s33 = sadd.s32 %s26, 1
      %s35 = sadd.s32 %s34, 1
      %p38 = scmp.eq.s32.totalorder %s26, 1
      %p39 = scmp.ne.s32.totalorder %s34, %s36
      %p40 = scmp.eq.s32.totalorder %s26, 0
      %p41 = por %p39, %p40
      %p42 = scmp.ne.s32.totalorder %s34, %s36
      %p43 = scmp.eq.s32.totalorder %s31, 1
      %p44 = por %p42, %p43
      %p45 = scmp.ne.s32.totalorder %s36, %s37
      %p46 = scmp.eq.s32.totalorder %s31, 0
      %p47 = por %p45, %p46
      %p48 = scmp.ne.s32.totalorder %s36, %s37
      %p49 = scmp.eq.s32.totalorder %s32, 1
      %p50 = por %p48, %p49
      %p52 = scmp.ne.s32.totalorder %s37, %s51
      %p53 = scmp.eq.s32.totalorder %s32, 0
      %p54 = por %p52, %p53
      %s56 = sadd.s32 %s55, 1
      %p59 = scmp.eq.s32.totalorder %s26, 1
      %p60 = scmp.ne.s32.totalorder %s55, %s57
      %p61 = scmp.eq.s32.totalorder %s26, 0
      %p62 = por %p60, %p61
      %p63 = scmp.ne.s32.totalorder %s55, %s57
      %p64 = scmp.eq.s32.totalorder %s31, 1
      %p65 = por %p63, %p64
      %p66 = scmp.ne.s32.totalorder %s57, %s58
      %p67 = scmp.eq.s32.totalorder %s31, 0
      %p68 = por %p66, %p67
      %p69 = scmp.ne.s32.totalorder %s57, %s58
      %p70 = scmp.eq.s32.totalorder %s32, 1
      %p71 = por %p69, %p70
      %p73 = scmp.ne.s32.totalorder %s58, %s72
      %p74 = scmp.eq.s32.totalorder %s32, 0
      %p75 = por %p73, %p74
      %s76 = ssub.s32 %s26, %s33
      %p77 = scmp.eq.s32.totalorder %s76, 0
      %s79 = sadd.s32 %s78, 1
      %s80 = scalar_select %p77, %s78, %s79
      %p83 = pneg %p77
      %p84 = scmp.eq.s32.totalorder %s26, 1
      %p85 = por %p83, %p84
      %p86 = scmp.ne.s32.totalorder %s78, %s81
      %p87 = scmp.eq.s32.totalorder %s26, 0
      %p88 = por %p86, %p87
      %p89 = scmp.ne.s32.totalorder %s78, %s81
      %p90 = scmp.eq.s32.totalorder %s31, 1
      %p91 = por %p89, %p90
      %p92 = scmp.ne.s32.totalorder %s81, %s82
      %p93 = scmp.eq.s32.totalorder %s31, 0
      %p94 = por %p92, %p93
      %p95 = scmp.ne.s32.totalorder %s81, %s82
      %p96 = scmp.eq.s32.totalorder %s32, 1
      %p97 = por %p95, %p96
      %p99 = scmp.ne.s32.totalorder %s82, %s98
      %p100 = scmp.eq.s32.totalorder %s32, 0
      %p101 = por %p99, %p100
      %s102 = ssub.s32 %s26, %s33
      %p103 = scmp.eq.s32.totalorder %s102, 0
      %s105 = sadd.s32 %s104, 1
      %s106 = scalar_select %p103, %s104, %s105
      %p109 = pneg %p103
      %p110 = scmp.eq.s32.totalorder %s26, 1
      %p111 = por %p109, %p110
      %p112 = scmp.ne.s32.totalorder %s104, %s107
      %p113 = scmp.eq.s32.totalorder %s26, 0
      %p114 = por %p112, %p113
      %p115 = scmp.ne.s32.totalorder %s104, %s107
      %p116 = scmp.eq.s32.totalorder %s31, 1
      %p117 = por %p115, %p116
      %p118 = scmp.ne.s32.totalorder %s107, %s108
      %p119 = scmp.eq.s32.totalorder %s31, 0
      %p120 = por %p118, %p119
      %p121 = scmp.ne.s32.totalorder %s107, %s108
      %p122 = scmp.eq.s32.totalorder %s32, 1
      %p123 = por %p121, %p122
      %p125 = scmp.ne.s32.totalorder %s108, %s124
      %p126 = scmp.eq.s32.totalorder %s32, 0
      %p127 = por %p125, %p126
      %s128 = ssub.s32 %s26, %s33
      %p129 = scmp.eq.s32.totalorder %s128, 0
      %s131 = sadd.s32 %s130, 1
      %s132 = scalar_select %p129, %s130, %s131
      %p135 = pneg %p129
      %p136 = scmp.eq.s32.totalorder %s26, 1
      %p137 = por %p135, %p136
      %p138 = scmp.ne.s32.totalorder %s130, %s133
      %p139 = scmp.eq.s32.totalorder %s26, 0
      %p140 = por %p138, %p139
      %p141 = scmp.ne.s32.totalorder %s130, %s133
      %p142 = scmp.eq.s32.totalorder %s31, 1
      %p143 = por %p141, %p142
      %p144 = scmp.ne.s32.totalorder %s133, %s134
      %p145 = scmp.eq.s32.totalorder %s31, 0
      %p146 = por %p144, %p145
      %p147 = scmp.ne.s32.totalorder %s133, %s134
      %p148 = scmp.eq.s32.totalorder %s32, 1
      %p149 = por %p147, %p148
      %p151 = scmp.ne.s32.totalorder %s134, %s150
      %p152 = scmp.eq.s32.totalorder %s32, 0
      %p153 = por %p151, %p152
      %s154 = ssub.s32 %s26, %s33
      %p155 = scmp.eq.s32.totalorder %s154, 0
      %s157 = sadd.s32 %s156, 1
      %s158 = scalar_select %p155, %s156, %s157
      %p161 = pneg %p155
      %p162 = scmp.eq.s32.totalorder %s26, 1
      %p163 = por %p161, %p162
      %p164 = scmp.ne.s32.totalorder %s156, %s159
      %p165 = scmp.eq.s32.totalorder %s26, 0
      %p166 = por %p164, %p165
      %p167 = scmp.ne.s32.totalorder %s156, %s159
      %p168 = scmp.eq.s32.totalorder %s31, 1
      %p169 = por %p167, %p168
      %p170 = scmp.ne.s32.totalorder %s159, %s160
      %p171 = scmp.eq.s32.totalorder %s31, 0
      %p172 = por %p170, %p171
      %p173 = scmp.ne.s32.totalorder %s159, %s160
      %p174 = scmp.eq.s32.totalorder %s32, 1
      %p175 = por %p173, %p174
      %p177 = scmp.ne.s32.totalorder %s160, %s176
      %p178 = scmp.eq.s32.totalorder %s32, 0
      %p179 = por %p177, %p178
      %s180 = ssub.s32 %s26, %s33
      %p181 = scmp.eq.s32.totalorder %s180, 0
      %s183 = sadd.s32 %s182, 1
      %s184 = scalar_select %p181, %s182, %s183
      %p187 = pneg %p181
      %p188 = scmp.eq.s32.totalorder %s26, 1
      %p189 = por %p187, %p188
      %p190 = scmp.ne.s32.totalorder %s182, %s185
      %p191 = scmp.eq.s32.totalorder %s26, 0
      %p192 = por %p190, %p191
      %p193 = scmp.ne.s32.totalorder %s182, %s185
      %p194 = scmp.eq.s32.totalorder %s31, 1
      %p195 = por %p193, %p194
      %p196 = scmp.ne.s32.totalorder %s185, %s186
      %p197 = scmp.eq.s32.totalorder %s31, 0
      %p198 = por %p196, %p197
      %p199 = scmp.ne.s32.totalorder %s185, %s186
      %p200 = scmp.eq.s32.totalorder %s32, 1
      %p201 = por %p199, %p200
      %p203 = scmp.ne.s32.totalorder %s186, %s202
      %p204 = scmp.eq.s32.totalorder %s32, 0
      %p205 = por %p203, %p204
      %s206 = ssub.s32 %s26, %s33
      %p207 = scmp.eq.s32.totalorder %s206, 0
      %s209 = sadd.s32 %s208, 1
      %s210 = scalar_select %p207, %s208, %s209
      %p213 = pneg %p207
      %p214 = scmp.eq.s32.totalorder %s26, 1
      %p215 = por %p213, %p214
      %p216 = scmp.ne.s32.totalorder %s208, %s211
      %p217 = scmp.eq.s32.totalorder %s26, 0
      %p218 = por %p216, %p217
      %p219 = scmp.ne.s32.totalorder %s208, %s211
      %p220 = scmp.eq.s32.totalorder %s31, 1
      %p221 = por %p219, %p220
      %p222 = scmp.ne.s32.totalorder %s211, %s212
      %p223 = scmp.eq.s32.totalorder %s31, 0
      %p224 = por %p222, %p223
      %p225 = scmp.ne.s32.totalorder %s211, %s212
      %p226 = scmp.eq.s32.totalorder %s32, 1
      %p227 = por %p225, %p226
      %p229 = scmp.ne.s32.totalorder %s212, %s228
      %p230 = scmp.eq.s32.totalorder %s32, 0
      %p231 = por %p229, %p230
      %s232 = ssub.s32 %s26, %s33
      %p233 = scmp.eq.s32.totalorder %s232, 0
      %s235 = sadd.s32 %s234, 1
      %s236 = scalar_select %p233, %s234, %s235
      %p239 = pneg %p233
      %p240 = scmp.eq.s32.totalorder %s26, 1
      %p241 = por %p239, %p240
      %p242 = scmp.ne.s32.totalorder %s234, %s237
      %p243 = scmp.eq.s32.totalorder %s26, 0
      %p244 = por %p242, %p243
      %p245 = scmp.ne.s32.totalorder %s234, %s237
      %p246 = scmp.eq.s32.totalorder %s31, 1
      %p247 = por %p245, %p246
      %p248 = scmp.ne.s32.totalorder %s237, %s238
      %p249 = scmp.eq.s32.totalorder %s31, 0
      %p250 = por %p248, %p249
      %p251 = scmp.ne.s32.totalorder %s237, %s238
      %p252 = scmp.eq.s32.totalorder %s32, 1
      %p253 = por %p251, %p252
      %p255 = scmp.ne.s32.totalorder %s238, %s254
      %p256 = scmp.eq.s32.totalorder %s32, 0
      %p257 = por %p255, %p256
      %p258 = scmp.le.s32.totalorder 1, %s26
      %p259 = scmp.lt.s32.totalorder %s26, 3
      %p260 = pnand %p258, %p259
      %p261 = pneg %p260
      // Predicated region
      $region9: #{tpu_custom_call.1} parent=5 // pred_check
        _
      $region10: #{tpu_custom_call.1} parent=5 // pred_check_branch
        %263 = sbr.rel (%p260) target = $region12
      $region11: #{tpu_custom_call.1} parent=5 // pred_region
        %s264 = ssub.s32 %s26, 1
        // Predicated region
        $region13: #{tpu_custom_call.1} parent=11 // pred_check
          %p265 = pneg %p47
        $region14: #{tpu_custom_call.1} parent=11 // pred_check_branch
          %267 = sbr.rel (%p265) target = $region16
        $region15: #{tpu_custom_call.1} parent=11 // pred_region
          %s269 = ssub.s32 256, 256
          %270 = vsyncadd [#allocation3], %s269
          %s271 = sshll.u32 [#allocation2], 4
          %s272 = int_to_ptr.vmem [resolvable:$true] %s271
          %277 = dma.hbm_to_vmem [thread:$0]  %s0, 256, %s272, [#allocation3], 128, 128, 8
        $region16: #{tpu_custom_call.1} parent=11 // pred_fallthru
          _
        // Predicated region
        $region17: #{tpu_custom_call.1} parent=11 // pred_check
          %p278 = pneg %p68
        $region18: #{tpu_custom_call.1} parent=11 // pred_check_branch
          %280 = sbr.rel (%p278) target = $region20
        $region19: #{tpu_custom_call.1} parent=11 // pred_region
          %s282 = ssub.s32 256, 256
          %283 = vsyncadd [#allocation6], %s282
          %s284 = sshll.u32 [#allocation5], 4
          %s285 = int_to_ptr.vmem [resolvable:$true] %s284
          %290 = dma.hbm_to_vmem [thread:$0]  %s1, 256, %s285, [#allocation6], 128, 128, 8
        $region20: #{tpu_custom_call.1} parent=11 // pred_fallthru
          _
      $region12: #{tpu_custom_call.1} parent=5 // pred_fallthru
        _
      %p291 = scmp.lt.s32.totalorder %s26, 2
      // Predicated region
      $region21: #{tpu_custom_call.1} parent=5 // pred_check
        %p292 = pneg %p291
      $region22: #{tpu_custom_call.1} parent=5 // pred_check_branch
        %294 = sbr.rel (%p292) target = $region24
      $region23: #{tpu_custom_call.1} parent=5 // pred_region
        // Predicated region
        $region25: #{tpu_custom_call.1} parent=23 // pred_check
          %p295 = pneg %p88
        $region26: #{tpu_custom_call.1} parent=23 // pred_check_branch
          %297 = sbr.rel (%p295) target = $region28
        $region27: #{tpu_custom_call.1} parent=23 // pred_region
          %s298 = sand.u32 %s26, 1
          %s299 = scalar_lea.sflag [#allocation3], %s298
          %s300 = sand.u32 %s78, 1
          %s301 = smul.addr %s300, 64
          %s302 = scalar_lea.vmem [#allocation7], %s301
          %s303 = smul.u32 4, %s26
          %s305 = ssub.s32 1024, 1024
          %306 = vsyncadd %s299, %s305
          %s307 = smul.addr %s303, 2
          %s308 = smul.addr %s307, 128
          %s309 = scalar_lea.hbm %s2, %s308
          %s310 = sshll.u32 %s302, 4
          %s311 = int_to_ptr.vmem [resolvable:$true] %s310
          %316 = dma.hbm_to_vmem [thread:$0]  %s309, 1024, %s311, %s299, 128, 128, 8
        $region28: #{tpu_custom_call.1} parent=23 // pred_fallthru
          _
        // Predicated region
        $region29: #{tpu_custom_call.1} parent=23 // pred_check
          %p317 = pneg %p114
        $region30: #{tpu_custom_call.1} parent=23 // pred_check_branch
          %319 = sbr.rel (%p317) target = $region32
        $region31: #{tpu_custom_call.1} parent=23 // pred_region
          %s320 = sand.u32 %s26, 1
          %s321 = scalar_lea.sflag [#allocation3], %s320
          %s322 = sand.u32 %s104, 1
          %s323 = smul.addr %s322, 64
          %s324 = scalar_lea.vmem [#allocation8], %s323
          %s325 = smul.u32 4, %s26
          %s327 = ssub.s32 1024, 1024
          %328 = vsyncadd %s321, %s327
          %s329 = smul.addr %s325, 2
          %s330 = smul.addr %s329, 128
          %s331 = scalar_lea.hbm %s3, %s330
          %s332 = sshll.u32 %s324, 4
          %s333 = int_to_ptr.vmem [resolvable:$true] %s332
          %338 = dma.hbm_to_vmem [thread:$0]  %s331, 1024, %s333, %s321, 128, 128, 8
        $region32: #{tpu_custom_call.1} parent=23 // pred_fallthru
          _
      $region24: #{tpu_custom_call.1} parent=5 // pred_fallthru
        _
      %p339 = scmp.le.s32.totalorder 1, %s26
      %p340 = scmp.lt.s32.totalorder %s26, 3
      %p341 = pnand %p339, %p340
      %p342 = pneg %p341
      // Predicated region
      $region33: #{tpu_custom_call.1} parent=5 // pred_check
        _
      $region34: #{tpu_custom_call.1} parent=5 // pred_check_branch
        %344 = sbr.rel (%p341) target = $region36
      $region35: #{tpu_custom_call.1} parent=5 // pred_region
        %s345 = ssub.s32 %s26, 1
        // Predicated region
        $region37: #{tpu_custom_call.1} parent=35 // pred_check
          %p346 = pneg %p47
        $region38: #{tpu_custom_call.1} parent=35 // pred_check_branch
          %348 = sbr.rel (%p346) target = $region40
        $region39: #{tpu_custom_call.1} parent=35 // pred_region
          %349 = dma.done [#allocation3], 256
        $region40: #{tpu_custom_call.1} parent=35 // pred_fallthru
          _
        // Predicated region
        $region41: #{tpu_custom_call.1} parent=35 // pred_check
          %p350 = pneg %p68
        $region42: #{tpu_custom_call.1} parent=35 // pred_check_branch
          %352 = sbr.rel (%p350) target = $region44
        $region43: #{tpu_custom_call.1} parent=35 // pred_region
          %353 = dma.done [#allocation6], 256
        $region44: #{tpu_custom_call.1} parent=35 // pred_fallthru
          _
        %s354 = sand.u32 %s31, 1
        %s355 = scalar_lea.sflag [#allocation3], %s354
        %s356 = sand.u32 %s81, 1
        %s357 = smul.addr %s356, 64
        %s358 = scalar_lea.vmem [#allocation7], %s357
        // Predicated region
        $region45: #{tpu_custom_call.1} parent=35 // pred_check
          %p359 = pneg %p94
        $region46: #{tpu_custom_call.1} parent=35 // pred_check_branch
          %361 = sbr.rel (%p359) target = $region48
        $region47: #{tpu_custom_call.1} parent=35 // pred_region
          %362 = dma.done %s355, 1024
        $region48: #{tpu_custom_call.1} parent=35 // pred_fallthru
          _
        %s363 = sand.u32 %s31, 1
        %s364 = scalar_lea.sflag [#allocation3], %s363
        %s365 = sand.u32 %s107, 1
        %s366 = smul.addr %s365, 64
        %s367 = scalar_lea.vmem [#allocation8], %s366
        // Predicated region
        $region49: #{tpu_custom_call.1} parent=35 // pred_check
          %p368 = pneg %p120
        $region50: #{tpu_custom_call.1} parent=35 // pred_check_branch
          %370 = sbr.rel (%p368) target = $region52
        $region51: #{tpu_custom_call.1} parent=35 // pred_region
          %371 = dma.done %s364, 1024
        $region52: #{tpu_custom_call.1} parent=35 // pred_fallthru
          _
        %p372 = pneg %p47
        %p373 = pneg %p44
        %p374 = pneg %p68
        %p375 = pneg %p65
        %s376 = sand.u32 %s31, 1
        %s377 = scalar_lea.sflag [#allocation3], %s376
        %s378 = sand.u32 %s81, 1
        %s379 = smul.addr %s378, 64
        %s380 = scalar_lea.vmem [#allocation7], %s379
        %p381 = pneg %p94
        %p382 = pneg %p91
        %s383 = sand.u32 %s31, 1
        %s384 = scalar_lea.sflag [#allocation3], %s383
        %s385 = sand.u32 %s107, 1
        %s386 = smul.addr %s385, 64
        %s387 = scalar_lea.vmem [#allocation8], %s386
        %p388 = pneg %p120
        %p389 = pneg %p117
        %p390 = pneg %p146
        %p391 = pneg %p143
        %s392 = sand.u32 %s133, 1
        %s393 = scalar_lea.sflag [#allocation4], %s392
        %s394 = sand.u32 %s133, 1
        %s395 = smul.addr %s394, 64
        %s396 = scalar_lea.vmem [#allocation9], %s395
        %p397 = pneg %p172
        %p398 = pneg %p169
        %s399 = sand.u32 %s31, 1
        %s400 = scalar_lea.sflag [#allocation11], %s399
        %s401 = sand.u32 %s159, 1
        %s402 = smul.addr %s401, 64
        %s403 = scalar_lea.vmem [#allocation10], %s402
        %p404 = pneg %p198
        %p405 = pneg %p195
        %s406 = sand.u32 %s31, 1
        %s407 = scalar_lea.sflag [#allocation11], %s406
        %s408 = sand.u32 %s185, 1
        %s409 = smul.addr %s408, 64
        %s410 = scalar_lea.vmem [#allocation12], %s409
        %p411 = pneg %p224
        %p412 = pneg %p221
        %s413 = sand.u32 %s31, 1
        %s414 = scalar_lea.sflag [#allocation14], %s413
        %s415 = sand.u32 %s211, 1
        %s416 = smul.addr %s415, 64
        %s417 = scalar_lea.vmem [#allocation13], %s416
        %p418 = pneg %p250
        %p419 = pneg %p247
        %s420 = sand.u32 %s31, 1
        %s421 = scalar_lea.sflag [#allocation14], %s420
        %s422 = sand.u32 %s237, 1
        %s423 = smul.addr %s422, 64
        %s424 = scalar_lea.vmem [#allocation15], %s423
        %s425 = smul.u32 4, %s31
        %s426 = smul.u32 4, %s31
        %s427 = smul.u32 4, %s31
        %s428 = smul.u32 4, %s31
        %s429 = smul.u32 4, %s31
        %s430 = smul.u32 4, %s31
        %s431 = smul.u32 4, %s31
        %v432 = vld [vmem:[#allocation2] sm:$0xff]
        %v433 = vld [vmem:[#allocation2 + $0x8] sm:$0xff]
        %v434 = vld [vmem:[#allocation5] sm:$0xff]
        %v435 = vld [vmem:[#allocation5 + $0x8] sm:$0xff]
        %v436 = vld [vmem:[%s358] sm:$0xff]
        %v437 = vld [vmem:[%s358 + $0x8] sm:$0xff]
        %v438 = vld [vmem:[%s358 + $0x10] sm:$0xff]
        %v439 = vld [vmem:[%s358 + $0x18] sm:$0xff]
        %v440 = vld [vmem:[%s358 + $0x20] sm:$0xff]
        %v441 = vld [vmem:[%s358 + $0x28] sm:$0xff]
        %v442 = vld [vmem:[%s358 + $0x30] sm:$0xff]
        %v443 = vld [vmem:[%s358 + $0x38] sm:$0xff]
        %v444 = vld [vmem:[%s367] sm:$0xff]
        %v445 = vld [vmem:[%s367 + $0x8] sm:$0xff]
        %v446 = vld [vmem:[%s367 + $0x10] sm:$0xff]
        %v447 = vld [vmem:[%s367 + $0x18] sm:$0xff]
        %v448 = vld [vmem:[%s367 + $0x20] sm:$0xff]
        %v449 = vld [vmem:[%s367 + $0x28] sm:$0xff]
        %v450 = vld [vmem:[%s367 + $0x30] sm:$0xff]
        %v451 = vld [vmem:[%s367 + $0x38] sm:$0xff]
        %v452 = vmul.f32 %v436, %v436
        %v453 = vmul.f32 %v437, %v437
        %v454 = vmul.f32 %v438, %v438
        %v455 = vmul.f32 %v439, %v439
        %v456 = vmul.f32 %v440, %v440
        %v457 = vmul.f32 %v441, %v441
        %v458 = vmul.f32 %v442, %v442
        %v459 = vmul.f32 %v443, %v443
        %v460 = vmul.f32 %v444, %v444
        %v461 = vmul.f32 %v445, %v445
        %v462 = vmul.f32 %v446, %v446
        %v463 = vmul.f32 %v447, %v447
        %v464 = vmul.f32 %v448, %v448
        %v465 = vmul.f32 %v449, %v449
        %v466 = vmul.f32 %v450, %v450
        %v467 = vmul.f32 %v451, %v451
        %v468 = vmul.f32 %v436, %v444
        %v469 = vmul.f32 %v437, %v445
        %v470 = vmul.f32 %v438, %v446
        %v471 = vmul.f32 %v439, %v447
        %v472 = vmul.f32 %v440, %v448
        %v473 = vmul.f32 %v441, %v449
        %v474 = vmul.f32 %v442, %v450
        %v475 = vmul.f32 %v443, %v451
        %vm476 = vcmask 130048
        %v478 = vsel %vm476, %v436, 0
        %v481 = vsel %vm476, %v437, 0
        %v484 = vsel %vm476, %v438, 0
        %v487 = vsel %vm476, %v439, 0
        %v490 = vsel %vm476, %v440, 0
        %v493 = vsel %vm476, %v441, 0
        %v496 = vsel %vm476, %v442, 0
        %v499 = vsel %vm476, %v443, 0
        %v502 = vsel %vm476, %v444, 0
        %v505 = vsel %vm476, %v445, 0
        %v508 = vsel %vm476, %v446, 0
        %v511 = vsel %vm476, %v447, 0
        %v514 = vsel %vm476, %v448, 0
        %v517 = vsel %vm476, %v449, 0
        %v520 = vsel %vm476, %v450, 0
        %v523 = vsel %vm476, %v451, 0
        %v526 = vsel %vm476, %v452, 0
        %v529 = vsel %vm476, %v453, 0
        %v532 = vsel %vm476, %v454, 0
        %v535 = vsel %vm476, %v455, 0
        %v538 = vsel %vm476, %v456, 0
        %v541 = vsel %vm476, %v457, 0
        %v544 = vsel %vm476, %v458, 0
        %v547 = vsel %vm476, %v459, 0
        %v550 = vsel %vm476, %v460, 0
        %v553 = vsel %vm476, %v461, 0
        %v556 = vsel %vm476, %v462, 0
        %v559 = vsel %vm476, %v463, 0
        %v562 = vsel %vm476, %v464, 0
        %v565 = vsel %vm476, %v465, 0
        %v568 = vsel %vm476, %v466, 0
        %v571 = vsel %vm476, %v467, 0
        %v574 = vsel %vm476, %v468, 0
        %v577 = vsel %vm476, %v469, 0
        %v580 = vsel %vm476, %v470, 0
        %v583 = vsel %vm476, %v471, 0
        %v586 = vsel %vm476, %v472, 0
        %v589 = vsel %vm476, %v473, 0
        %v592 = vsel %vm476, %v474, 0
        %v595 = vsel %vm476, %v475, 0
        %597 = vmatprep.subr.mxu0 0.0
        %598 = vmatpush1.msra.mxu0 %v434
        %599 = vmatprep.subr.mxu0 0.0
        %600 = vmatpush1.msra.mxu0 %v435
        %601 = vmatprep.subr.mxu0 0.0
        %602 = vmatpush1.msra.mxu0 0.0
        %603 = vmatprep.subr.mxu0 0.0
        %604 = vmatpush1.msra.mxu0 0.0
        %605 = vmatprep.subr.mxu0 0.0
        %606 = vmatpush1.msra.mxu0 0.0
        %607 = vmatprep.subr.mxu0 0.0
        %608 = vmatpush1.msra.mxu0 0.0
        %609 = vmatprep.subr.mxu0 0.0
        %610 = vmatpush1.msra.mxu0 0.0
        %611 = vmatprep.subr.mxu0 0.0
        %612 = vmatpush1.msra.mxu0 0.0
        %613 = vmatprep.subr.mxu0 0.0
        %614 = vmatpush1.msra.mxu0 0.0
        %615 = vmatprep.subr.mxu0 0.0
        %616 = vmatpush1.msra.mxu0 0.0
        %617 = vmatprep.subr.mxu0 0.0
        %618 = vmatpush1.msra.mxu0 0.0
        %619 = vmatprep.subr.mxu0 0.0
        %620 = vmatpush1.msra.mxu0 0.0
        %621 = vmatprep.subr.mxu0 0.0
        %622 = vmatpush1.msra.mxu0 0.0
        %623 = vmatprep.subr.mxu0 0.0
        %624 = vmatpush1.msra.mxu0 0.0
        %625 = vmatprep.subr.mxu0 0.0
        %626 = vmatpush1.msra.mxu0 0.0
        %627 = vmatprep.subr.mxu0 0.0
        %628 = vmatpush1.msra.mxu0 0.0
        %629 = vmatprep.subr.mxu0 0.0
        %630 = vmatpush1.msra.mxu0 0.0
        %631 = vmatprep.subr.mxu0 0.0
        %632 = vmatpush1.msra.mxu0 0.0
        %633 = vmatprep.subr.mxu0 0.0
        %634 = vmatpush1.msra.mxu0 0.0
        %635 = vmatprep.subr.mxu0 0.0
        %636 = vmatpush1.msra.mxu0 0.0
        %637 = vmatprep.subr.mxu0 0.0
        %638 = vmatpush1.msra.mxu0 0.0
        %639 = vmatprep.subr.mxu0 0.0
        %640 = vmatpush1.msra.mxu0 0.0
        %641 = vmatprep.subr.mxu0 0.0
        %642 = vmatpush1.msra.mxu0 0.0
        %643 = vmatprep.subr.mxu0 0.0
        %644 = vmatpush1.msra.mxu0 0.0
        %645 = vmatprep.subr.mxu0 0.0
        %646 = vmatpush1.msra.mxu0 0.0
        %647 = vmatprep.subr.mxu0 0.0
        %648 = vmatpush1.msra.mxu0 0.0
        %649 = vmatprep.subr.mxu0 0.0
        %650 = vmatpush1.msra.mxu0 0.0
        %651 = vmatprep.subr.mxu0 0.0
        %652 = vmatpush1.msra.mxu0 0.0
        %653 = vmatprep.subr.mxu0 0.0
        %654 = vmatpush1.msra.mxu0 0.0
        %655 = vmatprep.subr.mxu0 0.0
        %656 = vmatpush1.msra.mxu0 0.0
        %657 = vmatprep.subr.mxu0 0.0
        %658 = vmatpush1.msra.mxu0 0.0
        %659 = vmatprep.subr.mxu0 0.0
        %660 = vmatpush1.msra.mxu0 0.0
        %661 = vmatprep.mubr.f32.mxu0 0.0
        %662 = vmatmul.mubr.f32.gmra.mrb[0].mxu0 %v478
        %v663 = vpop.f32.mrb[0].mxu0
        %v664 = vadd.f32 0.0, %v663
        %v665 = vpop.f32.mrb[0].mxu0
        %666 = vmatprep.mubr.f32.mxu0 0.0
        %667 = vmatmul.mubr.f32.gmra.mrb[0].mxu0 %v481
        %v668 = vpop.f32.mrb[0].mxu0
        %v669 = vadd.f32 0.0, %v668
        %v670 = vpop.f32.mrb[0].mxu0
        %671 = vmatprep.mubr.f32.mxu0 0.0
        %672 = vmatmul.mubr.f32.gmra.mrb[0].mxu0 %v484
        %v673 = vpop.f32.mrb[0].mxu0
        %v674 = vadd.f32 0.0, %v673
        %v675 = vpop.f32.mrb[0].mxu0
        %676 = vmatprep.mubr.f32.mxu0 0.0
        %677 = vmatmul.mubr.f32.gmra.mrb[0].mxu0 %v487
        %v678 = vpop.f32.mrb[0].mxu0
        %v679 = vadd.f32 0.0, %v678
        %v680 = vpop.f32.mrb[0].mxu0
        %681 = vmatprep.mubr.f32.mxu0 0.0
        %682 = vmatmul.mubr.f32.gmra.mrb[0].mxu0 %v490
        %v683 = vpop.f32.mrb[0].mxu0
        %v684 = vadd.f32 0.0, %v683
        %v685 = vpop.f32.mrb[0].mxu0
        %686 = vmatprep.mubr.f32.mxu0 0.0
        %687 = vmatmul.mubr.f32.gmra.mrb[0].mxu0 %v493
        %v688 = vpop.f32.mrb[0].mxu0
        %v689 = vadd.f32 0.0, %v688
        %v690 = vpop.f32.mrb[0].mxu0
        %691 = vmatprep.mubr.f32.mxu0 0.0
        %692 = vmatmul.mubr.f32.gmra.mrb[0].mxu0 %v496
        %v693 = vpop.f32.mrb[0].mxu0
        %v694 = vadd.f32 0.0, %v693
        %v695 = vpop.f32.mrb[0].mxu0
        %696 = vmatprep.mubr.f32.mxu0 0.0
        %697 = vmatmul.mubr.f32.gmra.mrb[0].mxu0 %v499
        %v698 = vpop.f32.mrb[0].mxu0
        %v699 = vadd.f32 0.0, %v698
        %v700 = vpop.f32.mrb[0].mxu0
        %701 = vmatprep.mubr.f32.mxu0 0.0
        %702 = vmatmul.mubr.f32.gmra.mrb[0].mxu0 %v502
        %v703 = vpop.f32.mrb[0].mxu0
        %v704 = vadd.f32 0.0, %v703
        %v705 = vpop.f32.mrb[0].mxu0
        %706 = vmatprep.mubr.f32.mxu0 0.0
        %707 = vmatmul.mubr.f32.gmra.mrb[0].mxu0 %v505
        %v708 = vpop.f32.mrb[0].mxu0
        %v709 = vadd.f32 0.0, %v708
        %v710 = vpop.f32.mrb[0].mxu0
        %711 = vmatprep.mubr.f32.mxu0 0.0
        %712 = vmatmul.mubr.f32.gmra.mrb[0].mxu0 %v508
        %v713 = vpop.f32.mrb[0].mxu0
        %v714 = vadd.f32 0.0, %v713
        %v715 = vpop.f32.mrb[0].mxu0
        %716 = vmatprep.mubr.f32.mxu0 0.0
        %717 = vmatmul.mubr.f32.gmra.mrb[0].mxu0 %v511
        %v718 = vpop.f32.mrb[0].mxu0
        %v719 = vadd.f32 0.0, %v718
        %v720 = vpop.f32.mrb[0].mxu0
        %721 = vmatprep.mubr.f32.mxu0 0.0
        %722 = vmatmul.mubr.f32.gmra.mrb[0].mxu0 %v514
        %v723 = vpop.f32.mrb[0].mxu0
        %v724 = vadd.f32 0.0, %v723
        %v725 = vpop.f32.mrb[0].mxu0
        %726 = vmatprep.mubr.f32.mxu0 0.0
        %727 = vmatmul.mubr.f32.gmra.mrb[0].mxu0 %v517
        %v728 = vpop.f32.mrb[0].mxu0
        %v729 = vadd.f32 0.0, %v728
        %v730 = vpop.f32.mrb[0].mxu0
        %731 = vmatprep.mubr.f32.mxu0 0.0
        %732 = vmatmul.mubr.f32.gmra.mrb[0].mxu0 %v520
        %v733 = vpop.f32.mrb[0].mxu0
        %v734 = vadd.f32 0.0, %v733
        %v735 = vpop.f32.mrb[0].mxu0
        %736 = vmatprep.mubr.f32.mxu0 0.0
        %737 = vmatmul.mubr.f32.gmra.mrb[0].mxu0 %v523
        %v738 = vpop.f32.mrb[0].mxu0
        %v739 = vadd.f32 0.0, %v738
        %v740 = vpop.f32.mrb[0].mxu0
        %741 = vmatprep.mubr.f32.mxu0 0.0
        %742 = vmatmul.mubr.f32.gmra.mrb[0].mxu0 %v526
        %v743 = vpop.f32.mrb[0].mxu0
        %v744 = vadd.f32 0.0, %v743
        %v745 = vpop.f32.mrb[0].mxu0
        %746 = vmatprep.mubr.f32.mxu0 0.0
        %747 = vmatmul.mubr.f32.gmra.mrb[0].mxu0 %v529
        %v748 = vpop.f32.mrb[0].mxu0
        %v749 = vadd.f32 0.0, %v748
        %v750 = vpop.f32.mrb[0].mxu0
        %751 = vmatprep.mubr.f32.mxu0 0.0
        %752 = vmatmul.mubr.f32.gmra.mrb[0].mxu0 %v532
        %v753 = vpop.f32.mrb[0].mxu0
        %v754 = vadd.f32 0.0, %v753
        %v755 = vpop.f32.mrb[0].mxu0
        %756 = vmatprep.mubr.f32.mxu0 0.0
        %757 = vmatmul.mubr.f32.gmra.mrb[0].mxu0 %v535
        %v758 = vpop.f32.mrb[0].mxu0
        %v759 = vadd.f32 0.0, %v758
        %v760 = vpop.f32.mrb[0].mxu0
        %761 = vmatprep.mubr.f32.mxu0 0.0
        %762 = vmatmul.mubr.f32.gmra.mrb[0].mxu0 %v538
        %v763 = vpop.f32.mrb[0].mxu0
        %v764 = vadd.f32 0.0, %v763
        %v765 = vpop.f32.mrb[0].mxu0
        %766 = vmatprep.mubr.f32.mxu0 0.0
        %767 = vmatmul.mubr.f32.gmra.mrb[0].mxu0 %v541
        %v768 = vpop.f32.mrb[0].mxu0
        %v769 = vadd.f32 0.0, %v768
        %v770 = vpop.f32.mrb[0].mxu0
        %771 = vmatprep.mubr.f32.mxu0 0.0
        %772 = vmatmul.mubr.f32.gmra.mrb[0].mxu0 %v544
        %v773 = vpop.f32.mrb[0].mxu0
        %v774 = vadd.f32 0.0, %v773
        %v775 = vpop.f32.mrb[0].mxu0
        %776 = vmatprep.mubr.f32.mxu0 0.0
        %777 = vmatmul.mubr.f32.gmra.mrb[0].mxu0 %v547
        %v778 = vpop.f32.mrb[0].mxu0
        %v779 = vadd.f32 0.0, %v778
        %v780 = vpop.f32.mrb[0].mxu0
        %781 = vmatprep.mubr.f32.mxu0 0.0
        %782 = vmatmul.mubr.f32.gmra.mrb[0].mxu0 %v550
        %v783 = vpop.f32.mrb[0].mxu0
        %v784 = vadd.f32 0.0, %v783
        %v785 = vpop.f32.mrb[0].mxu0
        %786 = vmatprep.mubr.f32.mxu0 0.0
        %787 = vmatmul.mubr.f32.gmra.mrb[0].mxu0 %v553
        %v788 = vpop.f32.mrb[0].mxu0
        %v789 = vadd.f32 0.0, %v788
        %v790 = vpop.f32.mrb[0].mxu0
        %791 = vmatprep.mubr.f32.mxu0 0.0
        %792 = vmatmul.mubr.f32.gmra.mrb[0].mxu0 %v556
        %v793 = vpop.f32.mrb[0].mxu0
        %v794 = vadd.f32 0.0, %v793
        %v795 = vpop.f32.mrb[0].mxu0
        %796 = vmatprep.mubr.f32.mxu0 0.0
        %797 = vmatmul.mubr.f32.gmra.mrb[0].mxu0 %v559
        %v798 = vpop.f32.mrb[0].mxu0
        %v799 = vadd.f32 0.0, %v798
        %v800 = vpop.f32.mrb[0].mxu0
        %801 = vmatprep.mubr.f32.mxu0 0.0
        %802 = vmatmul.mubr.f32.gmra.mrb[0].mxu0 %v562
        %v803 = vpop.f32.mrb[0].mxu0
        %v804 = vadd.f32 0.0, %v803
        %v805 = vpop.f32.mrb[0].mxu0
        %806 = vmatprep.mubr.f32.mxu0 0.0
        %807 = vmatmul.mubr.f32.gmra.mrb[0].mxu0 %v565
        %v808 = vpop.f32.mrb[0].mxu0
        %v809 = vadd.f32 0.0, %v808
        %v810 = vpop.f32.mrb[0].mxu0
        %811 = vmatprep.mubr.f32.mxu0 0.0
        %812 = vmatmul.mubr.f32.gmra.mrb[0].mxu0 %v568
        %v813 = vpop.f32.mrb[0].mxu0
        %v814 = vadd.f32 0.0, %v813
        %v815 = vpop.f32.mrb[0].mxu0
        %816 = vmatprep.mubr.f32.mxu0 0.0
        %817 = vmatmul.mubr.f32.gmra.mrb[0].mxu0 %v571
        %v818 = vpop.f32.mrb[0].mxu0
        %v819 = vadd.f32 0.0, %v818
        %v820 = vpop.f32.mrb[0].mxu0
        %821 = vmatprep.mubr.f32.mxu0 0.0
        %822 = vmatmul.mubr.f32.gmra.mrb[0].mxu0 %v574
        %v823 = vpop.f32.mrb[0].mxu0
        %v824 = vadd.f32 0.0, %v823
        %v825 = vpop.f32.mrb[0].mxu0
        %826 = vmatprep.mubr.f32.mxu0 0.0
        %827 = vmatmul.mubr.f32.gmra.mrb[0].mxu0 %v577
        %v828 = vpop.f32.mrb[0].mxu0
        %v829 = vadd.f32 0.0, %v828
        %v830 = vpop.f32.mrb[0].mxu0
        %831 = vmatprep.mubr.f32.mxu0 0.0
        %832 = vmatmul.mubr.f32.gmra.mrb[0].mxu0 %v580
        %v833 = vpop.f32.mrb[0].mxu0
        %v834 = vadd.f32 0.0, %v833
        %v835 = vpop.f32.mrb[0].mxu0
        %836 = vmatprep.mubr.f32.mxu0 0.0
        %837 = vmatmul.mubr.f32.gmra.mrb[0].mxu0 %v583
        %v838 = vpop.f32.mrb[0].mxu0
        %v839 = vadd.f32 0.0, %v838
        %v840 = vpop.f32.mrb[0].mxu0
        %841 = vmatprep.mubr.f32.mxu0 0.0
        %842 = vmatmul.mubr.f32.gmra.mrb[0].mxu0 %v586
        %v843 = vpop.f32.mrb[0].mxu0
        %v844 = vadd.f32 0.0, %v843
        %v845 = vpop.f32.mrb[0].mxu0
        %846 = vmatprep.mubr.f32.mxu0 0.0
        %847 = vmatmul.mubr.f32.gmra.mrb[0].mxu0 %v589
        %v848 = vpop.f32.mrb[0].mxu0
        %v849 = vadd.f32 0.0, %v848
        %v850 = vpop.f32.mrb[0].mxu0
        %851 = vmatprep.mubr.f32.mxu0 0.0
        %852 = vmatmul.mubr.f32.gmra.mrb[0].mxu0 %v592
        %v853 = vpop.f32.mrb[0].mxu0
        %v854 = vadd.f32 0.0, %v853
        %v855 = vpop.f32.mrb[0].mxu0
        %856 = vmatprep.mubr.f32.mxu0 0.0
        %857 = vmatmul.mubr.f32.gmra.mrb[0].mxu0 %v595
        %v858 = vpop.f32.mrb[0].mxu0
        %v859 = vadd.f32 0.0, %v858
        %v860 = vpop.f32.mrb[0].mxu0
        %861 = vdwg.mxu0
        %v863 = vsel %vm476, %v432, 0
        %v866 = vsel %vm476, %v433, 0
        %868 = vmatprep.subr.mxu0 0.0
        %869 = vmatpush1.msra.mxu0 %v664
        %870 = vmatprep.subr.mxu0 0.0
        %871 = vmatpush1.msra.mxu0 %v669
        %872 = vmatprep.subr.mxu0 0.0
        %873 = vmatpush1.msra.mxu0 0.0
        %874 = vmatprep.subr.mxu0 0.0
        %875 = vmatpush1.msra.mxu0 0.0
        %876 = vmatprep.subr.mxu0 0.0
        %877 = vmatpush1.msra.mxu0 0.0
        %878 = vmatprep.subr.mxu0 0.0
        %879 = vmatpush1.msra.mxu0 0.0
        %880 = vmatprep.subr.mxu0 0.0
        %881 = vmatpush1.msra.mxu0 0.0
        %882 = vmatprep.subr.mxu0 0.0
        %883 = vmatpush1.msra.mxu0 0.0
        %884 = vmatprep.subr.mxu0 0.0
        %885 = vmatpush1.msra.mxu0 0.0
        %886 = vmatprep.subr.mxu0 0.0
        %887 = vmatpush1.msra.mxu0 0.0
        %888 = vmatprep.subr.mxu0 0.0
        %889 = vmatpush1.msra.mxu0 0.0
        %890 = vmatprep.subr.mxu0 0.0
        %891 = vmatpush1.msra.mxu0 0.0
        %892 = vmatprep.subr.mxu0 0.0
        %893 = vmatpush1.msra.mxu0 0.0
        %894 = vmatprep.subr.mxu0 0.0
        %895 = vmatpush1.msra.mxu0 0.0
        %896 = vmatprep.subr.mxu0 0.0
        %897 = vmatpush1.msra.mxu0 0.0
        %898 = vmatprep.subr.mxu0 0.0
        %899 = vmatpush1.msra.mxu0 0.0
        %900 = vmatprep.subr.mxu0 0.0
        %901 = vmatpush1.msra.mxu0 0.0
        %902 = vmatprep.subr.mxu0 0.0
        %903 = vmatpush1.msra.mxu0 0.0
        %904 = vmatprep.subr.mxu0 0.0
        %905 = vmatpush1.msra.mxu0 0.0
        %906 = vmatprep.subr.mxu0 0.0
        %907 = vmatpush1.msra.mxu0 0.0
        %908 = vmatprep.subr.mxu0 0.0
        %909 = vmatpush1.msra.mxu0 0.0
        %910 = vmatprep.subr.mxu0 0.0
        %911 = vmatpush1.msra.mxu0 0.0
        %912 = vmatprep.subr.mxu0 0.0
        %913 = vmatpush1.msra.mxu0 0.0
        %914 = vmatprep.subr.mxu0 0.0
        %915 = vmatpush1.msra.mxu0 0.0
        %916 = vmatprep.subr.mxu0 0.0
        %917 = vmatpush1.msra.mxu0 0.0
        %918 = vmatprep.subr.mxu0 0.0
        %919 = vmatpush1.msra.mxu0 0.0
        %920 = vmatprep.subr.mxu0 0.0
        %921 = vmatpush1.msra.mxu0 0.0
        %922 = vmatprep.subr.mxu0 0.0
        %923 = vmatpush1.msra.mxu0 0.0
        %924 = vmatprep.subr.mxu0 0.0
        %925 = vmatpush1.msra.mxu0 0.0
        %926 = vmatprep.subr.mxu0 0.0
        %927 = vmatpush1.msra.mxu0 0.0
        %928 = vmatprep.subr.mxu0 0.0
        %929 = vmatpush1.msra.mxu0 0.0
        %930 = vmatprep.subr.mxu0 0.0
        %931 = vmatpush1.msra.mxu0 0.0
        %932 = vmatprep.mubr.f32.mxu0 0.0
        %933 = vmatmul.mubr.f32.gmra.mrb[0].mxu0 %v863
        %v934 = vpop.f32.mrb[0].mxu0
        %v935 = vadd.f32 0.0, %v934
        %v936 = vpop.f32.mrb[0].mxu0
        %937 = vmatprep.mubr.f32.mxu0 0.0
        %938 = vmatmul.mubr.f32.gmra.mrb[0].mxu0 %v866
        %v939 = vpop.f32.mrb[0].mxu0
        %v940 = vadd.f32 0.0, %v939
        %v941 = vpop.f32.mrb[0].mxu0
        %942 = vdwg.mxu0
        %943 = vmatprep.subr.mxu0 0.0
        %944 = vmatpush1.msra.mxu0 %v674
        %945 = vmatprep.subr.mxu0 0.0
        %946 = vmatpush1.msra.mxu0 %v679
        %947 = vmatprep.subr.mxu0 0.0
        %948 = vmatpush1.msra.mxu0 0.0
        %949 = vmatprep.subr.mxu0 0.0
        %950 = vmatpush1.msra.mxu0 0.0
        %951 = vmatprep.subr.mxu0 0.0
        %952 = vmatpush1.msra.mxu0 0.0
        %953 = vmatprep.subr.mxu0 0.0
        %954 = vmatpush1.msra.mxu0 0.0
        %955 = vmatprep.subr.mxu0 0.0
        %956 = vmatpush1.msra.mxu0 0.0
        %957 = vmatprep.subr.mxu0 0.0
        %958 = vmatpush1.msra.mxu0 0.0
        %959 = vmatprep.subr.mxu0 0.0
        %960 = vmatpush1.msra.mxu0 0.0
        %961 = vmatprep.subr.mxu0 0.0
        %962 = vmatpush1.msra.mxu0 0.0
        %963 = vmatprep.subr.mxu0 0.0
        %964 = vmatpush1.msra.mxu0 0.0
        %965 = vmatprep.subr.mxu0 0.0
        %966 = vmatpush1.msra.mxu0 0.0
        %967 = vmatprep.subr.mxu0 0.0
        %968 = vmatpush1.msra.mxu0 0.0
        %969 = vmatprep.subr.mxu0 0.0
        %970 = vmatpush1.msra.mxu0 0.0
        %971 = vmatprep.subr.mxu0 0.0
        %972 = vmatpush1.msra.mxu0 0.0
        %973 = vmatprep.subr.mxu0 0.0
        %974 = vmatpush1.msra.mxu0 0.0
        %975 = vmatprep.subr.mxu0 0.0
        %976 = vmatpush1.msra.mxu0 0.0
        %977 = vmatprep.subr.mxu0 0.0
        %978 = vmatpush1.msra.mxu0 0.0
        %979 = vmatprep.subr.mxu0 0.0
        %980 = vmatpush1.msra.mxu0 0.0
        %981 = vmatprep.subr.mxu0 0.0
        %982 = vmatpush1.msra.mxu0 0.0
        %983 = vmatprep.subr.mxu0 0.0
        %984 = vmatpush1.msra.mxu0 0.0
        %985 = vmatprep.subr.mxu0 0.0
        %986 = vmatpush1.msra.mxu0 0.0
        %987 = vmatprep.subr.mxu0 0.0
        %988 = vmatpush1.msra.mxu0 0.0
        %989 = vmatprep.subr.mxu0 0.0
        %990 = vmatpush1.msra.mxu0 0.0
        %991 = vmatprep.subr.mxu0 0.0
        %992 = vmatpush1.msra.mxu0 0.0
        %993 = vmatprep.subr.mxu0 0.0
        %994 = vmatpush1.msra.mxu0 0.0
        %995 = vmatprep.subr.mxu0 0.0
        %996 = vmatpush1.msra.mxu0 0.0
        %997 = vmatprep.subr.mxu0 0.0
        %998 = vmatpush1.msra.mxu0 0.0
        %999 = vmatprep.subr.mxu0 0.0
        %1000 = vmatpush1.msra.mxu0 0.0
        %1001 = vmatprep.subr.mxu0 0.0
        %1002 = vmatpush1.msra.mxu0 0.0
        %1003 = vmatprep.subr.mxu0 0.0
        %1004 = vmatpush1.msra.mxu0 0.0
        %1005 = vmatprep.subr.mxu0 0.0
        %1006 = vmatpush1.msra.mxu0 0.0
        %1007 = vmatprep.mubr.f32.mxu0 0.0
        %1008 = vmatmul.mubr.f32.gmra.mrb[0].mxu0 %v863
        %v1009 = vpop.f32.mrb[0].mxu0
        %v1010 = vadd.f32 0.0, %v1009
        %v1011 = vpop.f32.mrb[0].mxu0
        %1012 = vmatprep.mubr.f32.mxu0 0.0
        %1013 = vmatmul.mubr.f32.gmra.mrb[0].mxu0 %v866
        %v1014 = vpop.f32.mrb[0].mxu0
        %v1015 = vadd.f32 0.0, %v1014
        %v1016 = vpop.f32.mrb[0].mxu0
        %1017 = vdwg.mxu0
        %1018 = vmatprep.subr.mxu0 0.0
        %1019 = vmatpush1.msra.mxu0 %v684
        %1020 = vmatprep.subr.mxu0 0.0
        %1021 = vmatpush1.msra.mxu0 %v689
        %1022 = vmatprep.subr.mxu0 0.0
        %1023 = vmatpush1.msra.mxu0 0.0
        %1024 = vmatprep.subr.mxu0 0.0
        %1025 = vmatpush1.msra.mxu0 0.0
        %1026 = vmatprep.subr.mxu0 0.0
        %1027 = vmatpush1.msra.mxu0 0.0
        %1028 = vmatprep.subr.mxu0 0.0
        %1029 = vmatpush1.msra.mxu0 0.0
        %1030 = vmatprep.subr.mxu0 0.0
        %1031 = vmatpush1.msra.mxu0 0.0
        %1032 = vmatprep.subr.mxu0 0.0
        %1033 = vmatpush1.msra.mxu0 0.0
        %1034 = vmatprep.subr.mxu0 0.0
        %1035 = vmatpush1.msra.mxu0 0.0
        %1036 = vmatprep.subr.mxu0 0.0
        %1037 = vmatpush1.msra.mxu0 0.0
        %1038 = vmatprep.subr.mxu0 0.0
        %1039 = vmatpush1.msra.mxu0 0.0
        %1040 = vmatprep.subr.mxu0 0.0
        %1041 = vmatpush1.msra.mxu0 0.0
        %1042 = vmatprep.subr.mxu0 0.0
        %1043 = vmatpush1.msra.mxu0 0.0
        %1044 = vmatprep.subr.mxu0 0.0
        %1045 = vmatpush1.msra.mxu0 0.0
        %1046 = vmatprep.subr.mxu0 0.0
        %1047 = vmatpush1.msra.mxu0 0.0
        %1048 = vmatprep.subr.mxu0 0.0
        %1049 = vmatpush1.msra.mxu0 0.0
        %1050 = vmatprep.subr.mxu0 0.0
        %1051 = vmatpush1.msra.mxu0 0.0
        %1052 = vmatprep.subr.mxu0 0.0
        %1053 = vmatpush1.msra.mxu0 0.0
        %1054 = vmatprep.subr.mxu0 0.0
        %1055 = vmatpush1.msra.mxu0 0.0
        %1056 = vmatprep.subr.mxu0 0.0
        %1057 = vmatpush1.msra.mxu0 0.0
        %1058 = vmatprep.subr.mxu0 0.0
        %1059 = vmatpush1.msra.mxu0 0.0
        %1060 = vmatprep.subr.mxu0 0.0
        %1061 = vmatpush1.msra.mxu0 0.0
        %1062 = vmatprep.subr.mxu0 0.0
        %1063 = vmatpush1.msra.mxu0 0.0
        %1064 = vmatprep.subr.mxu0 0.0
        %1065 = vmatpush1.msra.mxu0 0.0
        %1066 = vmatprep.subr.mxu0 0.0
        %1067 = vmatpush1.msra.mxu0 0.0
        %1068 = vmatprep.subr.mxu0 0.0
        %1069 = vmatpush1.msra.mxu0 0.0
        %1070 = vmatprep.subr.mxu0 0.0
        %1071 = vmatpush1.msra.mxu0 0.0
        %1072 = vmatprep.subr.mxu0 0.0
        %1073 = vmatpush1.msra.mxu0 0.0
        %1074 = vmatprep.subr.mxu0 0.0
        %1075 = vmatpush1.msra.mxu0 0.0
        %1076 = vmatprep.subr.mxu0 0.0
        %1077 = vmatpush1.msra.mxu0 0.0
        %1078 = vmatprep.subr.mxu0 0.0
        %1079 = vmatpush1.msra.mxu0 0.0
        %1080 = vmatprep.subr.mxu0 0.0
        %1081 = vmatpush1.msra.mxu0 0.0
        %1082 = vmatprep.mubr.f32.mxu0 0.0
        %1083 = vmatmul.mubr.f32.gmra.mrb[0].mxu0 %v863
        %v1084 = vpop.f32.mrb[0].mxu0
        %v1085 = vadd.f32 0.0, %v1084
        %v1086 = vpop.f32.mrb[0].mxu0
        %1087 = vmatprep.mubr.f32.mxu0 0.0
        %1088 = vmatmul.mubr.f32.gmra.mrb[0].mxu0 %v866
        %v1089 = vpop.f32.mrb[0].mxu0
        %v1090 = vadd.f32 0.0, %v1089
        %v1091 = vpop.f32.mrb[0].mxu0
        %1092 = vdwg.mxu0
        %1093 = vmatprep.subr.mxu0 0.0
        %1094 = vmatpush1.msra.mxu0 %v694
        %1095 = vmatprep.subr.mxu0 0.0
        %1096 = vmatpush1.msra.mxu0 %v699
        %1097 = vmatprep.subr.mxu0 0.0
        %1098 = vmatpush1.msra.mxu0 0.0
        %1099 = vmatprep.subr.mxu0 0.0
        %1100 = vmatpush1.msra.mxu0 0.0
        %1101 = vmatprep.subr.mxu0 0.0
        %1102 = vmatpush1.msra.mxu0 0.0
        %1103 = vmatprep.subr.mxu0 0.0
        %1104 = vmatpush1.msra.mxu0 0.0
        %1105 = vmatprep.subr.mxu0 0.0
        %1106 = vmatpush1.msra.mxu0 0.0
        %1107 = vmatprep.subr.mxu0 0.0
        %1108 = vmatpush1.msra.mxu0 0.0
        %1109 = vmatprep.subr.mxu0 0.0
        %1110 = vmatpush1.msra.mxu0 0.0
        %1111 = vmatprep.subr.mxu0 0.0
        %1112 = vmatpush1.msra.mxu0 0.0
        %1113 = vmatprep.subr.mxu0 0.0
        %1114 = vmatpush1.msra.mxu0 0.0
        %1115 = vmatprep.subr.mxu0 0.0
        %1116 = vmatpush1.msra.mxu0 0.0
        %1117 = vmatprep.subr.mxu0 0.0
        %1118 = vmatpush1.msra.mxu0 0.0
        %1119 = vmatprep.subr.mxu0 0.0
        %1120 = vmatpush1.msra.mxu0 0.0
        %1121 = vmatprep.subr.mxu0 0.0
        %1122 = vmatpush1.msra.mxu0 0.0
        %1123 = vmatprep.subr.mxu0 0.0
        %1124 = vmatpush1.msra.mxu0 0.0
        %1125 = vmatprep.subr.mxu0 0.0
        %1126 = vmatpush1.msra.mxu0 0.0
        %1127 = vmatprep.subr.mxu0 0.0
        %1128 = vmatpush1.msra.mxu0 0.0
        %1129 = vmatprep.subr.mxu0 0.0
        %1130 = vmatpush1.msra.mxu0 0.0
        %1131 = vmatprep.subr.mxu0 0.0
        %1132 = vmatpush1.msra.mxu0 0.0
        %1133 = vmatprep.subr.mxu0 0.0
        %1134 = vmatpush1.msra.mxu0 0.0
        %1135 = vmatprep.subr.mxu0 0.0
        %1136 = vmatpush1.msra.mxu0 0.0
        %1137 = vmatprep.subr.mxu0 0.0
        %1138 = vmatpush1.msra.mxu0 0.0
        %1139 = vmatprep.subr.mxu0 0.0
        %1140 = vmatpush1.msra.mxu0 0.0
        %1141 = vmatprep.subr.mxu0 0.0
        %1142 = vmatpush1.msra.mxu0 0.0
        %1143 = vmatprep.subr.mxu0 0.0
        %1144 = vmatpush1.msra.mxu0 0.0
        %1145 = vmatprep.subr.mxu0 0.0
        %1146 = vmatpush1.msra.mxu0 0.0
        %1147 = vmatprep.subr.mxu0 0.0
        %1148 = vmatpush1.msra.mxu0 0.0
        %1149 = vmatprep.subr.mxu0 0.0
        %1150 = vmatpush1.msra.mxu0 0.0
        %1151 = vmatprep.subr.mxu0 0.0
        %1152 = vmatpush1.msra.mxu0 0.0
        %1153 = vmatprep.subr.mxu0 0.0
        %1154 = vmatpush1.msra.mxu0 0.0
        %1155 = vmatprep.subr.mxu0 0.0
        %1156 = vmatpush1.msra.mxu0 0.0
        %1157 = vmatprep.mubr.f32.mxu0 0.0
        %1158 = vmatmul.mubr.f32.gmra.mrb[0].mxu0 %v863
        %v1159 = vpop.f32.mrb[0].mxu0
        %v1160 = vadd.f32 0.0, %v1159
        %v1161 = vpop.f32.mrb[0].mxu0
        %1162 = vmatprep.mubr.f32.mxu0 0.0
        %1163 = vmatmul.mubr.f32.gmra.mrb[0].mxu0 %v866
        %v1164 = vpop.f32.mrb[0].mxu0
        %v1165 = vadd.f32 0.0, %v1164
        %v1166 = vpop.f32.mrb[0].mxu0
        %1167 = vdwg.mxu0
        %1168 = vmatprep.subr.mxu0 0.0
        %1169 = vmatpush1.msra.mxu0 %v704
        %1170 = vmatprep.subr.mxu0 0.0
        %1171 = vmatpush1.msra.mxu0 %v709
        %1172 = vmatprep.subr.mxu0 0.0
        %1173 = vmatpush1.msra.mxu0 0.0
        %1174 = vmatprep.subr.mxu0 0.0
        %1175 = vmatpush1.msra.mxu0 0.0
        %1176 = vmatprep.subr.mxu0 0.0
        %1177 = vmatpush1.msra.mxu0 0.0
        %1178 = vmatprep.subr.mxu0 0.0
        %1179 = vmatpush1.msra.mxu0 0.0
        %1180 = vmatprep.subr.mxu0 0.0
        %1181 = vmatpush1.msra.mxu0 0.0
        %1182 = vmatprep.subr.mxu0 0.0
        %1183 = vmatpush1.msra.mxu0 0.0
        %1184 = vmatprep.subr.mxu0 0.0
        %1185 = vmatpush1.msra.mxu0 0.0
        %1186 = vmatprep.subr.mxu0 0.0
        %1187 = vmatpush1.msra.mxu0 0.0
        %1188 = vmatprep.subr.mxu0 0.0
        %1189 = vmatpush1.msra.mxu0 0.0
        %1190 = vmatprep.subr.mxu0 0.0
        %1191 = vmatpush1.msra.mxu0 0.0
        %1192 = vmatprep.subr.mxu0 0.0
        %1193 = vmatpush1.msra.mxu0 0.0
        %1194 = vmatprep.subr.mxu0 0.0
        %1195 = vmatpush1.msra.mxu0 0.0
        %1196 = vmatprep.subr.mxu0 0.0
        %1197 = vmatpush1.msra.mxu0 0.0
        %1198 = vmatprep.subr.mxu0 0.0
        %1199 = vmatpush1.msra.mxu0 0.0
        %1200 = vmatprep.subr.mxu0 0.0
        %1201 = vmatpush1.msra.mxu0 0.0
        %1202 = vmatprep.subr.mxu0 0.0
        %1203 = vmatpush1.msra.mxu0 0.0
        %1204 = vmatprep.subr.mxu0 0.0
        %1205 = vmatpush1.msra.mxu0 0.0
        %1206 = vmatprep.subr.mxu0 0.0
        %1207 = vmatpush1.msra.mxu0 0.0
        %1208 = vmatprep.subr.mxu0 0.0
        %1209 = vmatpush1.msra.mxu0 0.0
        %1210 = vmatprep.subr.mxu0 0.0
        %1211 = vmatpush1.msra.mxu0 0.0
        %1212 = vmatprep.subr.mxu0 0.0
        %1213 = vmatpush1.msra.mxu0 0.0
        %1214 = vmatprep.subr.mxu0 0.0
        %1215 = vmatpush1.msra.mxu0 0.0
        %1216 = vmatprep.subr.mxu0 0.0
        %1217 = vmatpush1.msra.mxu0 0.0
        %1218 = vmatprep.subr.mxu0 0.0
        %1219 = vmatpush1.msra.mxu0 0.0
        %1220 = vmatprep.subr.mxu0 0.0
        %1221 = vmatpush1.msra.mxu0 0.0
        %1222 = vmatprep.subr.mxu0 0.0
        %1223 = vmatpush1.msra.mxu0 0.0
        %1224 = vmatprep.subr.mxu0 0.0
        %1225 = vmatpush1.msra.mxu0 0.0
        %1226 = vmatprep.subr.mxu0 0.0
        %1227 = vmatpush1.msra.mxu0 0.0
        %1228 = vmatprep.subr.mxu0 0.0
        %1229 = vmatpush1.msra.mxu0 0.0
        %1230 = vmatprep.subr.mxu0 0.0
        %1231 = vmatpush1.msra.mxu0 0.0
        %1232 = vmatprep.mubr.f32.mxu0 0.0
        %1233 = vmatmul.mubr.f32.gmra.mrb[0].mxu0 %v863
        %v1234 = vpop.f32.mrb[0].mxu0
        %v1235 = vadd.f32 0.0, %v1234
        %v1236 = vpop.f32.mrb[0].mxu0
        %1237 = vmatprep.mubr.f32.mxu0 0.0
        %1238 = vmatmul.mubr.f32.gmra.mrb[0].mxu0 %v866
        %v1239 = vpop.f32.mrb[0].mxu0
        %v1240 = vadd.f32 0.0, %v1239
        %v1241 = vpop.f32.mrb[0].mxu0
        %1242 = vdwg.mxu0
        %1243 = vmatprep.subr.mxu0 0.0
        %1244 = vmatpush1.msra.mxu0 %v714
        %1245 = vmatprep.subr.mxu0 0.0
        %1246 = vmatpush1.msra.mxu0 %v719
        %1247 = vmatprep.subr.mxu0 0.0
        %1248 = vmatpush1.msra.mxu0 0.0
        %1249 = vmatprep.subr.mxu0 0.0
        %1250 = vmatpush1.msra.mxu0 0.0
        %1251 = vmatprep.subr.mxu0 0.0
        %1252 = vmatpush1.msra.mxu0 0.0
        %1253 = vmatprep.subr.mxu0 0.0
        %1254 = vmatpush1.msra.mxu0 0.0
        %1255 = vmatprep.subr.mxu0 0.0
        %1256 = vmatpush1.msra.mxu0 0.0
        %1257 = vmatprep.subr.mxu0 0.0
        %1258 = vmatpush1.msra.mxu0 0.0
        %1259 = vmatprep.subr.mxu0 0.0
        %1260 = vmatpush1.msra.mxu0 0.0
        %1261 = vmatprep.subr.mxu0 0.0
        %1262 = vmatpush1.msra.mxu0 0.0
        %1263 = vmatprep.subr.mxu0 0.0
        %1264 = vmatpush1.msra.mxu0 0.0
        %1265 = vmatprep.subr.mxu0 0.0
        %1266 = vmatpush1.msra.mxu0 0.0
        %1267 = vmatprep.subr.mxu0 0.0
        %1268 = vmatpush1.msra.mxu0 0.0
        %1269 = vmatprep.subr.mxu0 0.0
        %1270 = vmatpush1.msra.mxu0 0.0
        %1271 = vmatprep.subr.mxu0 0.0
        %1272 = vmatpush1.msra.mxu0 0.0
        %1273 = vmatprep.subr.mxu0 0.0
        %1274 = vmatpush1.msra.mxu0 0.0
        %1275 = vmatprep.subr.mxu0 0.0
        %1276 = vmatpush1.msra.mxu0 0.0
        %1277 = vmatprep.subr.mxu0 0.0
        %1278 = vmatpush1.msra.mxu0 0.0
        %1279 = vmatprep.subr.mxu0 0.0
        %1280 = vmatpush1.msra.mxu0 0.0
        %1281 = vmatprep.subr.mxu0 0.0
        %1282 = vmatpush1.msra.mxu0 0.0
        %1283 = vmatprep.subr.mxu0 0.0
        %1284 = vmatpush1.msra.mxu0 0.0
        %1285 = vmatprep.subr.mxu0 0.0
        %1286 = vmatpush1.msra.mxu0 0.0
        %1287 = vmatprep.subr.mxu0 0.0
        %1288 = vmatpush1.msra.mxu0 0.0
        %1289 = vmatprep.subr.mxu0 0.0
        %1290 = vmatpush1.msra.mxu0 0.0
        %1291 = vmatprep.subr.mxu0 0.0
        %1292 = vmatpush1.msra.mxu0 0.0
        %1293 = vmatprep.subr.mxu0 0.0
        %1294 = vmatpush1.msra.mxu0 0.0
        %1295 = vmatprep.subr.mxu0 0.0
        %1296 = vmatpush1.msra.mxu0 0.0
        %1297 = vmatprep.subr.mxu0 0.0
        %1298 = vmatpush1.msra.mxu0 0.0
        %1299 = vmatprep.subr.mxu0 0.0
        %1300 = vmatpush1.msra.mxu0 0.0
        %1301 = vmatprep.subr.mxu0 0.0
        %1302 = vmatpush1.msra.mxu0 0.0
        %1303 = vmatprep.subr.mxu0 0.0
        %1304 = vmatpush1.msra.mxu0 0.0
        %1305 = vmatprep.subr.mxu0 0.0
        %1306 = vmatpush1.msra.mxu0 0.0
        %1307 = vmatprep.mubr.f32.mxu0 0.0
        %1308 = vmatmul.mubr.f32.gmra.mrb[0].mxu0 %v863
        %v1309 = vpop.f32.mrb[0].mxu0
        %v1310 = vadd.f32 0.0, %v1309
        %v1311 = vpop.f32.mrb[0].mxu0
        %1312 = vmatprep.mubr.f32.mxu0 0.0
        %1313 = vmatmul.mubr.f32.gmra.mrb[0].mxu0 %v866
        %v1314 = vpop.f32.mrb[0].mxu0
        %v1315 = vadd.f32 0.0, %v1314
        %v1316 = vpop.f32.mrb[0].mxu0
        %1317 = vdwg.mxu0
        %1318 = vmatprep.subr.mxu0 0.0
        %1319 = vmatpush1.msra.mxu0 %v724
        %1320 = vmatprep.subr.mxu0 0.0
        %1321 = vmatpush1.msra.mxu0 %v729
        %1322 = vmatprep.subr.mxu0 0.0
        %1323 = vmatpush1.msra.mxu0 0.0
        %1324 = vmatprep.subr.mxu0 0.0
        %1325 = vmatpush1.msra.mxu0 0.0
        %1326 = vmatprep.subr.mxu0 0.0
        %1327 = vmatpush1.msra.mxu0 0.0
        %1328 = vmatprep.subr.mxu0 0.0
        %1329 = vmatpush1.msra.mxu0 0.0
        %1330 = vmatprep.subr.mxu0 0.0
        %1331 = vmatpush1.msra.mxu0 0.0
        %1332 = vmatprep.subr.mxu0 0.0
        %1333 = vmatpush1.msra.mxu0 0.0
        %1334 = vmatprep.subr.mxu0 0.0
        %1335 = vmatpush1.msra.mxu0 0.0
        %1336 = vmatprep.subr.mxu0 0.0
        %1337 = vmatpush1.msra.mxu0 0.0
        %1338 = vmatprep.subr.mxu0 0.0
        %1339 = vmatpush1.msra.mxu0 0.0
        %1340 = vmatprep.subr.mxu0 0.0
        %1341 = vmatpush1.msra.mxu0 0.0
        %1342 = vmatprep.subr.mxu0 0.0
        %1343 = vmatpush1.msra.mxu0 0.0
        %1344 = vmatprep.subr.mxu0 0.0
        %1345 = vmatpush1.msra.mxu0 0.0
        %1346 = vmatprep.subr.mxu0 0.0
        %1347 = vmatpush1.msra.mxu0 0.0
        %1348 = vmatprep.subr.mxu0 0.0
        %1349 = vmatpush1.msra.mxu0 0.0
        %1350 = vmatprep.subr.mxu0 0.0
        %1351 = vmatpush1.msra.mxu0 0.0
        %1352 = vmatprep.subr.mxu0 0.0
        %1353 = vmatpush1.msra.mxu0 0.0
        %1354 = vmatprep.subr.mxu0 0.0
        %1355 = vmatpush1.msra.mxu0 0.0
        %1356 = vmatprep.subr.mxu0 0.0
        %1357 = vmatpush1.msra.mxu0 0.0
        %1358 = vmatprep.subr.mxu0 0.0
        %1359 = vmatpush1.msra.mxu0 0.0
        %1360 = vmatprep.subr.mxu0 0.0
        %1361 = vmatpush1.msra.mxu0 0.0
        %1362 = vmatprep.subr.mxu0 0.0
        %1363 = vmatpush1.msra.mxu0 0.0
        %1364 = vmatprep.subr.mxu0 0.0
        %1365 = vmatpush1.msra.mxu0 0.0
        %1366 = vmatprep.subr.mxu0 0.0
        %1367 = vmatpush1.msra.mxu0 0.0
        %1368 = vmatprep.subr.mxu0 0.0
        %1369 = vmatpush1.msra.mxu0 0.0
        %1370 = vmatprep.subr.mxu0 0.0
        %1371 = vmatpush1.msra.mxu0 0.0
        %1372 = vmatprep.subr.mxu0 0.0
        %1373 = vmatpush1.msra.mxu0 0.0
        %1374 = vmatprep.subr.mxu0 0.0
        %1375 = vmatpush1.msra.mxu0 0.0
        %1376 = vmatprep.subr.mxu0 0.0
        %1377 = vmatpush1.msra.mxu0 0.0
        %1378 = vmatprep.subr.mxu0 0.0
        %1379 = vmatpush1.msra.mxu0 0.0
        %1380 = vmatprep.subr.mxu0 0.0
        %1381 = vmatpush1.msra.mxu0 0.0
        %1382 = vmatprep.mubr.f32.mxu0 0.0
        %1383 = vmatmul.mubr.f32.gmra.mrb[0].mxu0 %v863
        %v1384 = vpop.f32.mrb[0].mxu0
        %v1385 = vadd.f32 0.0, %v1384
        %v1386 = vpop.f32.mrb[0].mxu0
        %1387 = vmatprep.mubr.f32.mxu0 0.0
        %1388 = vmatmul.mubr.f32.gmra.mrb[0].mxu0 %v866
        %v1389 = vpop.f32.mrb[0].mxu0
        %v1390 = vadd.f32 0.0, %v1389
        %v1391 = vpop.f32.mrb[0].mxu0
        %1392 = vdwg.mxu0
        %1393 = vmatprep.subr.mxu0 0.0
        %1394 = vmatpush1.msra.mxu0 %v734
        %1395 = vmatprep.subr.mxu0 0.0
        %1396 = vmatpush1.msra.mxu0 %v739
        %1397 = vmatprep.subr.mxu0 0.0
        %1398 = vmatpush1.msra.mxu0 0.0
        %1399 = vmatprep.subr.mxu0 0.0
        %1400 = vmatpush1.msra.mxu0 0.0
        %1401 = vmatprep.subr.mxu0 0.0
        %1402 = vmatpush1.msra.mxu0 0.0
        %1403 = vmatprep.subr.mxu0 0.0
        %1404 = vmatpush1.msra.mxu0 0.0
        %1405 = vmatprep.subr.mxu0 0.0
        %1406 = vmatpush1.msra.mxu0 0.0
        %1407 = vmatprep.subr.mxu0 0.0
        %1408 = vmatpush1.msra.mxu0 0.0
        %1409 = vmatprep.subr.mxu0 0.0
        %1410 = vmatpush1.msra.mxu0 0.0
        %1411 = vmatprep.subr.mxu0 0.0
        %1412 = vmatpush1.msra.mxu0 0.0
        %1413 = vmatprep.subr.mxu0 0.0
        %1414 = vmatpush1.msra.mxu0 0.0
        %1415 = vmatprep.subr.mxu0 0.0
        %1416 = vmatpush1.msra.mxu0 0.0
        %1417 = vmatprep.subr.mxu0 0.0
        %1418 = vmatpush1.msra.mxu0 0.0
        %1419 = vmatprep.subr.mxu0 0.0
        %1420 = vmatpush1.msra.mxu0 0.0
        %1421 = vmatprep.subr.mxu0 0.0
        %1422 = vmatpush1.msra.mxu0 0.0
        %1423 = vmatprep.subr.mxu0 0.0
        %1424 = vmatpush1.msra.mxu0 0.0
        %1425 = vmatprep.subr.mxu0 0.0
        %1426 = vmatpush1.msra.mxu0 0.0
        %1427 = vmatprep.subr.mxu0 0.0
        %1428 = vmatpush1.msra.mxu0 0.0
        %1429 = vmatprep.subr.mxu0 0.0
        %1430 = vmatpush1.msra.mxu0 0.0
        %1431 = vmatprep.subr.mxu0 0.0
        %1432 = vmatpush1.msra.mxu0 0.0
        %1433 = vmatprep.subr.mxu0 0.0
        %1434 = vmatpush1.msra.mxu0 0.0
        %1435 = vmatprep.subr.mxu0 0.0
        %1436 = vmatpush1.msra.mxu0 0.0
        %1437 = vmatprep.subr.mxu0 0.0
        %1438 = vmatpush1.msra.mxu0 0.0
        %1439 = vmatprep.subr.mxu0 0.0
        %1440 = vmatpush1.msra.mxu0 0.0
        %1441 = vmatprep.subr.mxu0 0.0
        %1442 = vmatpush1.msra.mxu0 0.0
        %1443 = vmatprep.subr.mxu0 0.0
        %1444 = vmatpush1.msra.mxu0 0.0
        %1445 = vmatprep.subr.mxu0 0.0
        %1446 = vmatpush1.msra.mxu0 0.0
        %1447 = vmatprep.subr.mxu0 0.0
        %1448 = vmatpush1.msra.mxu0 0.0
        %1449 = vmatprep.subr.mxu0 0.0
        %1450 = vmatpush1.msra.mxu0 0.0
        %1451 = vmatprep.subr.mxu0 0.0
        %1452 = vmatpush1.msra.mxu0 0.0
        %1453 = vmatprep.subr.mxu0 0.0
        %1454 = vmatpush1.msra.mxu0 0.0
        %1455 = vmatprep.subr.mxu0 0.0
        %1456 = vmatpush1.msra.mxu0 0.0
        %1457 = vmatprep.mubr.f32.mxu0 0.0
        %1458 = vmatmul.mubr.f32.gmra.mrb[0].mxu0 %v863
        %v1459 = vpop.f32.mrb[0].mxu0
        %v1460 = vadd.f32 0.0, %v1459
        %v1461 = vpop.f32.mrb[0].mxu0
        %1462 = vmatprep.mubr.f32.mxu0 0.0
        %1463 = vmatmul.mubr.f32.gmra.mrb[0].mxu0 %v866
        %v1464 = vpop.f32.mrb[0].mxu0
        %v1465 = vadd.f32 0.0, %v1464
        %v1466 = vpop.f32.mrb[0].mxu0
        %1467 = vdwg.mxu0
        %1468 = vmatprep.subr.mxu0 0.0
        %1469 = vmatpush1.msra.mxu0 %v744
        %1470 = vmatprep.subr.mxu0 0.0
        %1471 = vmatpush1.msra.mxu0 %v749
        %1472 = vmatprep.subr.mxu0 0.0
        %1473 = vmatpush1.msra.mxu0 0.0
        %1474 = vmatprep.subr.mxu0 0.0
        %1475 = vmatpush1.msra.mxu0 0.0
        %1476 = vmatprep.subr.mxu0 0.0
        %1477 = vmatpush1.msra.mxu0 0.0
        %1478 = vmatprep.subr.mxu0 0.0
        %1479 = vmatpush1.msra.mxu0 0.0
        %1480 = vmatprep.subr.mxu0 0.0
        %1481 = vmatpush1.msra.mxu0 0.0
        %1482 = vmatprep.subr.mxu0 0.0
        %1483 = vmatpush1.msra.mxu0 0.0
        %1484 = vmatprep.subr.mxu0 0.0
        %1485 = vmatpush1.msra.mxu0 0.0
        %1486 = vmatprep.subr.mxu0 0.0
        %1487 = vmatpush1.msra.mxu0 0.0
        %1488 = vmatprep.subr.mxu0 0.0
        %1489 = vmatpush1.msra.mxu0 0.0
        %1490 = vmatprep.subr.mxu0 0.0
        %1491 = vmatpush1.msra.mxu0 0.0
        %1492 = vmatprep.subr.mxu0 0.0
        %1493 = vmatpush1.msra.mxu0 0.0
        %1494 = vmatprep.subr.mxu0 0.0
        %1495 = vmatpush1.msra.mxu0 0.0
        %1496 = vmatprep.subr.mxu0 0.0
        %1497 = vmatpush1.msra.mxu0 0.0
        %1498 = vmatprep.subr.mxu0 0.0
        %1499 = vmatpush1.msra.mxu0 0.0
        %1500 = vmatprep.subr.mxu0 0.0
        %1501 = vmatpush1.msra.mxu0 0.0
        %1502 = vmatprep.subr.mxu0 0.0
        %1503 = vmatpush1.msra.mxu0 0.0
        %1504 = vmatprep.subr.mxu0 0.0
        %1505 = vmatpush1.msra.mxu0 0.0
        %1506 = vmatprep.subr.mxu0 0.0
        %1507 = vmatpush1.msra.mxu0 0.0
        %1508 = vmatprep.subr.mxu0 0.0
        %1509 = vmatpush1.msra.mxu0 0.0
        %1510 = vmatprep.subr.mxu0 0.0
        %1511 = vmatpush1.msra.mxu0 0.0
        %1512 = vmatprep.subr.mxu0 0.0
        %1513 = vmatpush1.msra.mxu0 0.0
        %1514 = vmatprep.subr.mxu0 0.0
        %1515 = vmatpush1.msra.mxu0 0.0
        %1516 = vmatprep.subr.mxu0 0.0
        %1517 = vmatpush1.msra.mxu0 0.0
        %1518 = vmatprep.subr.mxu0 0.0
        %1519 = vmatpush1.msra.mxu0 0.0
        %1520 = vmatprep.subr.mxu0 0.0
        %1521 = vmatpush1.msra.mxu0 0.0
        %1522 = vmatprep.subr.mxu0 0.0
        %1523 = vmatpush1.msra.mxu0 0.0
        %1524 = vmatprep.subr.mxu0 0.0
        %1525 = vmatpush1.msra.mxu0 0.0
        %1526 = vmatprep.subr.mxu0 0.0
        %1527 = vmatpush1.msra.mxu0 0.0
        %1528 = vmatprep.subr.mxu0 0.0
        %1529 = vmatpush1.msra.mxu0 0.0
        %1530 = vmatprep.subr.mxu0 0.0
        %1531 = vmatpush1.msra.mxu0 0.0
        %1532 = vmatprep.mubr.f32.mxu0 0.0
        %1533 = vmatmul.mubr.f32.gmra.mrb[0].mxu0 %v863
        %v1534 = vpop.f32.mrb[0].mxu0
        %v1535 = vadd.f32 0.0, %v1534
        %v1536 = vpop.f32.mrb[0].mxu0
        %1537 = vmatprep.mubr.f32.mxu0 0.0
        %1538 = vmatmul.mubr.f32.gmra.mrb[0].mxu0 %v866
        %v1539 = vpop.f32.mrb[0].mxu0
        %v1540 = vadd.f32 0.0, %v1539
        %v1541 = vpop.f32.mrb[0].mxu0
        %1542 = vdwg.mxu0
        %1543 = vmatprep.subr.mxu0 0.0
        %1544 = vmatpush1.msra.mxu0 %v754
        %1545 = vmatprep.subr.mxu0 0.0
        %1546 = vmatpush1.msra.mxu0 %v759
        %1547 = vmatprep.subr.mxu0 0.0
        %1548 = vmatpush1.msra.mxu0 0.0
        %1549 = vmatprep.subr.mxu0 0.0
        %1550 = vmatpush1.msra.mxu0 0.0
        %1551 = vmatprep.subr.mxu0 0.0
        %1552 = vmatpush1.msra.mxu0 0.0
        %1553 = vmatprep.subr.mxu0 0.0
        %1554 = vmatpush1.msra.mxu0 0.0
        %1555 = vmatprep.subr.mxu0 0.0
        %1556 = vmatpush1.msra.mxu0 0.0
        %1557 = vmatprep.subr.mxu0 0.0
        %1558 = vmatpush1.msra.mxu0 0.0
        %1559 = vmatprep.subr.mxu0 0.0
        %1560 = vmatpush1.msra.mxu0 0.0
        %1561 = vmatprep.subr.mxu0 0.0
        %1562 = vmatpush1.msra.mxu0 0.0
        %1563 = vmatprep.subr.mxu0 0.0
        %1564 = vmatpush1.msra.mxu0 0.0
        %1565 = vmatprep.subr.mxu0 0.0
        %1566 = vmatpush1.msra.mxu0 0.0
        %1567 = vmatprep.subr.mxu0 0.0
        %1568 = vmatpush1.msra.mxu0 0.0
        %1569 = vmatprep.subr.mxu0 0.0
        %1570 = vmatpush1.msra.mxu0 0.0
        %1571 = vmatprep.subr.mxu0 0.0
        %1572 = vmatpush1.msra.mxu0 0.0
        %1573 = vmatprep.subr.mxu0 0.0
        %1574 = vmatpush1.msra.mxu0 0.0
        %1575 = vmatprep.subr.mxu0 0.0
        %1576 = vmatpush1.msra.mxu0 0.0
        %1577 = vmatprep.subr.mxu0 0.0
        %1578 = vmatpush1.msra.mxu0 0.0
        %1579 = vmatprep.subr.mxu0 0.0
        %1580 = vmatpush1.msra.mxu0 0.0
        %1581 = vmatprep.subr.mxu0 0.0
        %1582 = vmatpush1.msra.mxu0 0.0
        %1583 = vmatprep.subr.mxu0 0.0
        %1584 = vmatpush1.msra.mxu0 0.0
        %1585 = vmatprep.subr.mxu0 0.0
        %1586 = vmatpush1.msra.mxu0 0.0
        %1587 = vmatprep.subr.mxu0 0.0
        %1588 = vmatpush1.msra.mxu0 0.0
        %1589 = vmatprep.subr.mxu0 0.0
        %1590 = vmatpush1.msra.mxu0 0.0
        %1591 = vmatprep.subr.mxu0 0.0
        %1592 = vmatpush1.msra.mxu0 0.0
        %1593 = vmatprep.subr.mxu0 0.0
        %1594 = vmatpush1.msra.mxu0 0.0
        %1595 = vmatprep.subr.mxu0 0.0
        %1596 = vmatpush1.msra.mxu0 0.0
        %1597 = vmatprep.subr.mxu0 0.0
        %1598 = vmatpush1.msra.mxu0 0.0
        %1599 = vmatprep.subr.mxu0 0.0
        %1600 = vmatpush1.msra.mxu0 0.0
        %1601 = vmatprep.subr.mxu0 0.0
        %1602 = vmatpush1.msra.mxu0 0.0
        %1603 = vmatprep.subr.mxu0 0.0
        %1604 = vmatpush1.msra.mxu0 0.0
        %1605 = vmatprep.subr.mxu0 0.0
        %1606 = vmatpush1.msra.mxu0 0.0
        %1607 = vmatprep.mubr.f32.mxu0 0.0
        %1608 = vmatmul.mubr.f32.gmra.mrb[0].mxu0 %v863
        %v1609 = vpop.f32.mrb[0].mxu0
        %v1610 = vadd.f32 0.0, %v1609
        %v1611 = vpop.f32.mrb[0].mxu0
        %1612 = vmatprep.mubr.f32.mxu0 0.0
        %1613 = vmatmul.mubr.f32.gmra.mrb[0].mxu0 %v866
        %v1614 = vpop.f32.mrb[0].mxu0
        %v1615 = vadd.f32 0.0, %v1614
        %v1616 = vpop.f32.mrb[0].mxu0
        %1617 = vdwg.mxu0
        %1618 = vmatprep.subr.mxu0 0.0
        %1619 = vmatpush1.msra.mxu0 %v764
        %1620 = vmatprep.subr.mxu0 0.0
        %1621 = vmatpush1.msra.mxu0 %v769
        %1622 = vmatprep.subr.mxu0 0.0
        %1623 = vmatpush1.msra.mxu0 0.0
        %1624 = vmatprep.subr.mxu0 0.0
        %1625 = vmatpush1.msra.mxu0 0.0
        %1626 = vmatprep.subr.mxu0 0.0
        %1627 = vmatpush1.msra.mxu0 0.0
        %1628 = vmatprep.subr.mxu0 0.0
        %1629 = vmatpush1.msra.mxu0 0.0
        %1630 = vmatprep.subr.mxu0 0.0
        %1631 = vmatpush1.msra.mxu0 0.0
        %1632 = vmatprep.subr.mxu0 0.0
        %1633 = vmatpush1.msra.mxu0 0.0
        %1634 = vmatprep.subr.mxu0 0.0
        %1635 = vmatpush1.msra.mxu0 0.0
        %1636 = vmatprep.subr.mxu0 0.0
        %1637 = vmatpush1.msra.mxu0 0.0
        %1638 = vmatprep.subr.mxu0 0.0
        %1639 = vmatpush1.msra.mxu0 0.0
        %1640 = vmatprep.subr.mxu0 0.0
        %1641 = vmatpush1.msra.mxu0 0.0
        %1642 = vmatprep.subr.mxu0 0.0
        %1643 = vmatpush1.msra.mxu0 0.0
        %1644 = vmatprep.subr.mxu0 0.0
        %1645 = vmatpush1.msra.mxu0 0.0
        %1646 = vmatprep.subr.mxu0 0.0
        %1647 = vmatpush1.msra.mxu0 0.0
        %1648 = vmatprep.subr.mxu0 0.0
        %1649 = vmatpush1.msra.mxu0 0.0
        %1650 = vmatprep.subr.mxu0 0.0
        %1651 = vmatpush1.msra.mxu0 0.0
        %1652 = vmatprep.subr.mxu0 0.0
        %1653 = vmatpush1.msra.mxu0 0.0
        %1654 = vmatprep.subr.mxu0 0.0
        %1655 = vmatpush1.msra.mxu0 0.0
        %1656 = vmatprep.subr.mxu0 0.0
        %1657 = vmatpush1.msra.mxu0 0.0
        %1658 = vmatprep.subr.mxu0 0.0
        %1659 = vmatpush1.msra.mxu0 0.0
        %1660 = vmatprep.subr.mxu0 0.0
        %1661 = vmatpush1.msra.mxu0 0.0
        %1662 = vmatprep.subr.mxu0 0.0
        %1663 = vmatpush1.msra.mxu0 0.0
        %1664 = vmatprep.subr.mxu0 0.0
        %1665 = vmatpush1.msra.mxu0 0.0
        %1666 = vmatprep.subr.mxu0 0.0
        %1667 = vmatpush1.msra.mxu0 0.0
        %1668 = vmatprep.subr.mxu0 0.0
        %1669 = vmatpush1.msra.mxu0 0.0
        %1670 = vmatprep.subr.mxu0 0.0
        %1671 = vmatpush1.msra.mxu0 0.0
        %1672 = vmatprep.subr.mxu0 0.0
        %1673 = vmatpush1.msra.mxu0 0.0
        %1674 = vmatprep.subr.mxu0 0.0
        %1675 = vmatpush1.msra.mxu0 0.0
        %1676 = vmatprep.subr.mxu0 0.0
        %1677 = vmatpush1.msra.mxu0 0.0
        %1678 = vmatprep.subr.mxu0 0.0
        %1679 = vmatpush1.msra.mxu0 0.0
        %1680 = vmatprep.subr.mxu0 0.0
        %1681 = vmatpush1.msra.mxu0 0.0
        %1682 = vmatprep.mubr.f32.mxu0 0.0
        %1683 = vmatmul.mubr.f32.gmra.mrb[0].mxu0 %v863
        %v1684 = vpop.f32.mrb[0].mxu0
        %v1685 = vadd.f32 0.0, %v1684
        %v1686 = vpop.f32.mrb[0].mxu0
        %1687 = vmatprep.mubr.f32.mxu0 0.0
        %1688 = vmatmul.mubr.f32.gmra.mrb[0].mxu0 %v866
        %v1689 = vpop.f32.mrb[0].mxu0
        %v1690 = vadd.f32 0.0, %v1689
        %v1691 = vpop.f32.mrb[0].mxu0
        %1692 = vdwg.mxu0
        %1693 = vmatprep.subr.mxu0 0.0
        %1694 = vmatpush1.msra.mxu0 %v774
        %1695 = vmatprep.subr.mxu0 0.0
        %1696 = vmatpush1.msra.mxu0 %v779
        %1697 = vmatprep.subr.mxu0 0.0
        %1698 = vmatpush1.msra.mxu0 0.0
        %1699 = vmatprep.subr.mxu0 0.0
        %1700 = vmatpush1.msra.mxu0 0.0
        %1701 = vmatprep.subr.mxu0 0.0
        %1702 = vmatpush1.msra.mxu0 0.0
        %1703 = vmatprep.subr.mxu0 0.0
        %1704 = vmatpush1.msra.mxu0 0.0
        %1705 = vmatprep.subr.mxu0 0.0
        %1706 = vmatpush1.msra.mxu0 0.0
        %1707 = vmatprep.subr.mxu0 0.0
        %1708 = vmatpush1.msra.mxu0 0.0
        %1709 = vmatprep.subr.mxu0 0.0
        %1710 = vmatpush1.msra.mxu0 0.0
        %1711 = vmatprep.subr.mxu0 0.0
        %1712 = vmatpush1.msra.mxu0 0.0
        %1713 = vmatprep.subr.mxu0 0.0
        %1714 = vmatpush1.msra.mxu0 0.0
        %1715 = vmatprep.subr.mxu0 0.0
        %1716 = vmatpush1.msra.mxu0 0.0
        %1717 = vmatprep.subr.mxu0 0.0
        %1718 = vmatpush1.msra.mxu0 0.0
        %1719 = vmatprep.subr.mxu0 0.0
        %1720 = vmatpush1.msra.mxu0 0.0
        %1721 = vmatprep.subr.mxu0 0.0
        %1722 = vmatpush1.msra.mxu0 0.0
        %1723 = vmatprep.subr.mxu0 0.0
        %1724 = vmatpush1.msra.mxu0 0.0
        %1725 = vmatprep.subr.mxu0 0.0
        %1726 = vmatpush1.msra.mxu0 0.0
        %1727 = vmatprep.subr.mxu0 0.0
        %1728 = vmatpush1.msra.mxu0 0.0
        %1729 = vmatprep.subr.mxu0 0.0
        %1730 = vmatpush1.msra.mxu0 0.0
        %1731 = vmatprep.subr.mxu0 0.0
        %1732 = vmatpush1.msra.mxu0 0.0
        %1733 = vmatprep.subr.mxu0 0.0
        %1734 = vmatpush1.msra.mxu0 0.0
        %1735 = vmatprep.subr.mxu0 0.0
        %1736 = vmatpush1.msra.mxu0 0.0
        %1737 = vmatprep.subr.mxu0 0.0
        %1738 = vmatpush1.msra.mxu0 0.0
        %1739 = vmatprep.subr.mxu0 0.0
        %1740 = vmatpush1.msra.mxu0 0.0
        %1741 = vmatprep.subr.mxu0 0.0
        %1742 = vmatpush1.msra.mxu0 0.0
        %1743 = vmatprep.subr.mxu0 0.0
        %1744 = vmatpush1.msra.mxu0 0.0
        %1745 = vmatprep.subr.mxu0 0.0
        %1746 = vmatpush1.msra.mxu0 0.0
        %1747 = vmatprep.subr.mxu0 0.0
        %1748 = vmatpush1.msra.mxu0 0.0
        %1749 = vmatprep.subr.mxu0 0.0
        %1750 = vmatpush1.msra.mxu0 0.0
        %1751 = vmatprep.subr.mxu0 0.0
        %1752 = vmatpush1.msra.mxu0 0.0
        %1753 = vmatprep.subr.mxu0 0.0
        %1754 = vmatpush1.msra.mxu0 0.0
        %1755 = vmatprep.subr.mxu0 0.0
        %1756 = vmatpush1.msra.mxu0 0.0
        %1757 = vmatprep.mubr.f32.mxu0 0.0
        %1758 = vmatmul.mubr.f32.gmra.mrb[0].mxu0 %v863
        %v1759 = vpop.f32.mrb[0].mxu0
        %v1760 = vadd.f32 0.0, %v1759
        %v1761 = vpop.f32.mrb[0].mxu0
        %1762 = vmatprep.mubr.f32.mxu0 0.0
        %1763 = vmatmul.mubr.f32.gmra.mrb[0].mxu0 %v866
        %v1764 = vpop.f32.mrb[0].mxu0
        %v1765 = vadd.f32 0.0, %v1764
        %v1766 = vpop.f32.mrb[0].mxu0
        %1767 = vdwg.mxu0
        %1768 = vmatprep.subr.mxu0 0.0
        %1769 = vmatpush1.msra.mxu0 %v784
        %1770 = vmatprep.subr.mxu0 0.0
        %1771 = vmatpush1.msra.mxu0 %v789
        %1772 = vmatprep.subr.mxu0 0.0
        %1773 = vmatpush1.msra.mxu0 0.0
        %1774 = vmatprep.subr.mxu0 0.0
        %1775 = vmatpush1.msra.mxu0 0.0
        %1776 = vmatprep.subr.mxu0 0.0
        %1777 = vmatpush1.msra.mxu0 0.0
        %1778 = vmatprep.subr.mxu0 0.0
        %1779 = vmatpush1.msra.mxu0 0.0
        %1780 = vmatprep.subr.mxu0 0.0
        %1781 = vmatpush1.msra.mxu0 0.0
        %1782 = vmatprep.subr.mxu0 0.0
        %1783 = vmatpush1.msra.mxu0 0.0
        %1784 = vmatprep.subr.mxu0 0.0
        %1785 = vmatpush1.msra.mxu0 0.0
        %1786 = vmatprep.subr.mxu0 0.0
        %1787 = vmatpush1.msra.mxu0 0.0
        %1788 = vmatprep.subr.mxu0 0.0
        %1789 = vmatpush1.msra.mxu0 0.0
        %1790 = vmatprep.subr.mxu0 0.0
        %1791 = vmatpush1.msra.mxu0 0.0
        %1792 = vmatprep.subr.mxu0 0.0
        %1793 = vmatpush1.msra.mxu0 0.0
        %1794 = vmatprep.subr.mxu0 0.0
        %1795 = vmatpush1.msra.mxu0 0.0
        %1796 = vmatprep.subr.mxu0 0.0
        %1797 = vmatpush1.msra.mxu0 0.0
        %1798 = vmatprep.subr.mxu0 0.0
        %1799 = vmatpush1.msra.mxu0 0.0
        %1800 = vmatprep.subr.mxu0 0.0
        %1801 = vmatpush1.msra.mxu0 0.0
        %1802 = vmatprep.subr.mxu0 0.0
        %1803 = vmatpush1.msra.mxu0 0.0
        %1804 = vmatprep.subr.mxu0 0.0
        %1805 = vmatpush1.msra.mxu0 0.0
        %1806 = vmatprep.subr.mxu0 0.0
        %1807 = vmatpush1.msra.mxu0 0.0
        %1808 = vmatprep.subr.mxu0 0.0
        %1809 = vmatpush1.msra.mxu0 0.0
        %1810 = vmatprep.subr.mxu0 0.0
        %1811 = vmatpush1.msra.mxu0 0.0
        %1812 = vmatprep.subr.mxu0 0.0
        %1813 = vmatpush1.msra.mxu0 0.0
        %1814 = vmatprep.subr.mxu0 0.0
        %1815 = vmatpush1.msra.mxu0 0.0
        %1816 = vmatprep.subr.mxu0 0.0
        %1817 = vmatpush1.msra.mxu0 0.0
        %1818 = vmatprep.subr.mxu0 0.0
        %1819 = vmatpush1.msra.mxu0 0.0
        %1820 = vmatprep.subr.mxu0 0.0
        %1821 = vmatpush1.msra.mxu0 0.0
        %1822 = vmatprep.subr.mxu0 0.0
        %1823 = vmatpush1.msra.mxu0 0.0
        %1824 = vmatprep.subr.mxu0 0.0
        %1825 = vmatpush1.msra.mxu0 0.0
        %1826 = vmatprep.subr.mxu0 0.0
        %1827 = vmatpush1.msra.mxu0 0.0
        %1828 = vmatprep.subr.mxu0 0.0
        %1829 = vmatpush1.msra.mxu0 0.0
        %1830 = vmatprep.subr.mxu0 0.0
        %1831 = vmatpush1.msra.mxu0 0.0
        %1832 = vmatprep.mubr.f32.mxu0 0.0
        %1833 = vmatmul.mubr.f32.gmra.mrb[0].mxu0 %v863
        %v1834 = vpop.f32.mrb[0].mxu0
        %v1835 = vadd.f32 0.0, %v1834
        %v1836 = vpop.f32.mrb[0].mxu0
        %1837 = vmatprep.mubr.f32.mxu0 0.0
        %1838 = vmatmul.mubr.f32.gmra.mrb[0].mxu0 %v866
        %v1839 = vpop.f32.mrb[0].mxu0
        %v1840 = vadd.f32 0.0, %v1839
        %v1841 = vpop.f32.mrb[0].mxu0
        %1842 = vdwg.mxu0
        %1843 = vmatprep.subr.mxu0 0.0
        %1844 = vmatpush1.msra.mxu0 %v794
        %1845 = vmatprep.subr.mxu0 0.0
        %1846 = vmatpush1.msra.mxu0 %v799
        %1847 = vmatprep.subr.mxu0 0.0
        %1848 = vmatpush1.msra.mxu0 0.0
        %1849 = vmatprep.subr.mxu0 0.0
        %1850 = vmatpush1.msra.mxu0 0.0
        %1851 = vmatprep.subr.mxu0 0.0
        %1852 = vmatpush1.msra.mxu0 0.0
        %1853 = vmatprep.subr.mxu0 0.0
        %1854 = vmatpush1.msra.mxu0 0.0
        %1855 = vmatprep.subr.mxu0 0.0
        %1856 = vmatpush1.msra.mxu0 0.0
        %1857 = vmatprep.subr.mxu0 0.0
        %1858 = vmatpush1.msra.mxu0 0.0
        %1859 = vmatprep.subr.mxu0 0.0
        %1860 = vmatpush1.msra.mxu0 0.0
        %1861 = vmatprep.subr.mxu0 0.0
        %1862 = vmatpush1.msra.mxu0 0.0
        %1863 = vmatprep.subr.mxu0 0.0
        %1864 = vmatpush1.msra.mxu0 0.0
        %1865 = vmatprep.subr.mxu0 0.0
        %1866 = vmatpush1.msra.mxu0 0.0
        %1867 = vmatprep.subr.mxu0 0.0
        %1868 = vmatpush1.msra.mxu0 0.0
        %1869 = vmatprep.subr.mxu0 0.0
        %1870 = vmatpush1.msra.mxu0 0.0
        %1871 = vmatprep.subr.mxu0 0.0
        %1872 = vmatpush1.msra.mxu0 0.0
        %1873 = vmatprep.subr.mxu0 0.0
        %1874 = vmatpush1.msra.mxu0 0.0
        %1875 = vmatprep.subr.mxu0 0.0
        %1876 = vmatpush1.msra.mxu0 0.0
        %1877 = vmatprep.subr.mxu0 0.0
        %1878 = vmatpush1.msra.mxu0 0.0
        %1879 = vmatprep.subr.mxu0 0.0
        %1880 = vmatpush1.msra.mxu0 0.0
        %1881 = vmatprep.subr.mxu0 0.0
        %1882 = vmatpush1.msra.mxu0 0.0
        %1883 = vmatprep.subr.mxu0 0.0
        %1884 = vmatpush1.msra.mxu0 0.0
        %1885 = vmatprep.subr.mxu0 0.0
        %1886 = vmatpush1.msra.mxu0 0.0
        %1887 = vmatprep.subr.mxu0 0.0
        %1888 = vmatpush1.msra.mxu0 0.0
        %1889 = vmatprep.subr.mxu0 0.0
        %1890 = vmatpush1.msra.mxu0 0.0
        %1891 = vmatprep.subr.mxu0 0.0
        %1892 = vmatpush1.msra.mxu0 0.0
        %1893 = vmatprep.subr.mxu0 0.0
        %1894 = vmatpush1.msra.mxu0 0.0
        %1895 = vmatprep.subr.mxu0 0.0
        %1896 = vmatpush1.msra.mxu0 0.0
        %1897 = vmatprep.subr.mxu0 0.0
        %1898 = vmatpush1.msra.mxu0 0.0
        %1899 = vmatprep.subr.mxu0 0.0
        %1900 = vmatpush1.msra.mxu0 0.0
        %1901 = vmatprep.subr.mxu0 0.0
        %1902 = vmatpush1.msra.mxu0 0.0
        %1903 = vmatprep.subr.mxu0 0.0
        %1904 = vmatpush1.msra.mxu0 0.0
        %1905 = vmatprep.subr.mxu0 0.0
        %1906 = vmatpush1.msra.mxu0 0.0
        %1907 = vmatprep.mubr.f32.mxu0 0.0
        %1908 = vmatmul.mubr.f32.gmra.mrb[0].mxu0 %v863
        %v1909 = vpop.f32.mrb[0].mxu0
        %v1910 = vadd.f32 0.0, %v1909
        %v1911 = vpop.f32.mrb[0].mxu0
        %1912 = vmatprep.mubr.f32.mxu0 0.0
        %1913 = vmatmul.mubr.f32.gmra.mrb[0].mxu0 %v866
        %v1914 = vpop.f32.mrb[0].mxu0
        %v1915 = vadd.f32 0.0, %v1914
        %v1916 = vpop.f32.mrb[0].mxu0
        %1917 = vdwg.mxu0
        %1918 = vmatprep.subr.mxu0 0.0
        %1919 = vmatpush1.msra.mxu0 %v804
        %1920 = vmatprep.subr.mxu0 0.0
        %1921 = vmatpush1.msra.mxu0 %v809
        %1922 = vmatprep.subr.mxu0 0.0
        %1923 = vmatpush1.msra.mxu0 0.0
        %1924 = vmatprep.subr.mxu0 0.0
        %1925 = vmatpush1.msra.mxu0 0.0
        %1926 = vmatprep.subr.mxu0 0.0
        %1927 = vmatpush1.msra.mxu0 0.0
        %1928 = vmatprep.subr.mxu0 0.0
        %1929 = vmatpush1.msra.mxu0 0.0
        %1930 = vmatprep.subr.mxu0 0.0
        %1931 = vmatpush1.msra.mxu0 0.0
        %1932 = vmatprep.subr.mxu0 0.0
        %1933 = vmatpush1.msra.mxu0 0.0
        %1934 = vmatprep.subr.mxu0 0.0
        %1935 = vmatpush1.msra.mxu0 0.0
        %1936 = vmatprep.subr.mxu0 0.0
        %1937 = vmatpush1.msra.mxu0 0.0
        %1938 = vmatprep.subr.mxu0 0.0
        %1939 = vmatpush1.msra.mxu0 0.0
        %1940 = vmatprep.subr.mxu0 0.0
        %1941 = vmatpush1.msra.mxu0 0.0
        %1942 = vmatprep.subr.mxu0 0.0
        %1943 = vmatpush1.msra.mxu0 0.0
        %1944 = vmatprep.subr.mxu0 0.0
        %1945 = vmatpush1.msra.mxu0 0.0
        %1946 = vmatprep.subr.mxu0 0.0
        %1947 = vmatpush1.msra.mxu0 0.0
        %1948 = vmatprep.subr.mxu0 0.0
        %1949 = vmatpush1.msra.mxu0 0.0
        %1950 = vmatprep.subr.mxu0 0.0
        %1951 = vmatpush1.msra.mxu0 0.0
        %1952 = vmatprep.subr.mxu0 0.0
        %1953 = vmatpush1.msra.mxu0 0.0
        %1954 = vmatprep.subr.mxu0 0.0
        %1955 = vmatpush1.msra.mxu0 0.0
        %1956 = vmatprep.subr.mxu0 0.0
        %1957 = vmatpush1.msra.mxu0 0.0
        %1958 = vmatprep.subr.mxu0 0.0
        %1959 = vmatpush1.msra.mxu0 0.0
        %1960 = vmatprep.subr.mxu0 0.0
        %1961 = vmatpush1.msra.mxu0 0.0
        %1962 = vmatprep.subr.mxu0 0.0
        %1963 = vmatpush1.msra.mxu0 0.0
        %1964 = vmatprep.subr.mxu0 0.0
        %1965 = vmatpush1.msra.mxu0 0.0
        %1966 = vmatprep.subr.mxu0 0.0
        %1967 = vmatpush1.msra.mxu0 0.0
        %1968 = vmatprep.subr.mxu0 0.0
        %1969 = vmatpush1.msra.mxu0 0.0
        %1970 = vmatprep.subr.mxu0 0.0
        %1971 = vmatpush1.msra.mxu0 0.0
        %1972 = vmatprep.subr.mxu0 0.0
        %1973 = vmatpush1.msra.mxu0 0.0
        %1974 = vmatprep.subr.mxu0 0.0
        %1975 = vmatpush1.msra.mxu0 0.0
        %1976 = vmatprep.subr.mxu0 0.0
        %1977 = vmatpush1.msra.mxu0 0.0
        %1978 = vmatprep.subr.mxu0 0.0
        %1979 = vmatpush1.msra.mxu0 0.0
        %1980 = vmatprep.subr.mxu0 0.0
        %1981 = vmatpush1.msra.mxu0 0.0
        %1982 = vmatprep.mubr.f32.mxu0 0.0
        %1983 = vmatmul.mubr.f32.gmra.mrb[0].mxu0 %v863
        %v1984 = vpop.f32.mrb[0].mxu0
        %v1985 = vadd.f32 0.0, %v1984
        %v1986 = vpop.f32.mrb[0].mxu0
        %1987 = vmatprep.mubr.f32.mxu0 0.0
        %1988 = vmatmul.mubr.f32.gmra.mrb[0].mxu0 %v866
        %v1989 = vpop.f32.mrb[0].mxu0
        %v1990 = vadd.f32 0.0, %v1989
        %v1991 = vpop.f32.mrb[0].mxu0
        %1992 = vdwg.mxu0
        %1993 = vmatprep.subr.mxu0 0.0
        %1994 = vmatpush1.msra.mxu0 %v814
        %1995 = vmatprep.subr.mxu0 0.0
        %1996 = vmatpush1.msra.mxu0 %v819
        %1997 = vmatprep.subr.mxu0 0.0
        %1998 = vmatpush1.msra.mxu0 0.0
        %1999 = vmatprep.subr.mxu0 0.0
        %2000 = vmatpush1.msra.mxu0 0.0
        %2001 = vmatprep.subr.mxu0 0.0
        %2002 = vmatpush1.msra.mxu0 0.0
        %2003 = vmatprep.subr.mxu0 0.0
        %2004 = vmatpush1.msra.mxu0 0.0
        %2005 = vmatprep.subr.mxu0 0.0
        %2006 = vmatpush1.msra.mxu0 0.0
        %2007 = vmatprep.subr.mxu0 0.0
        %2008 = vmatpush1.msra.mxu0 0.0
        %2009 = vmatprep.subr.mxu0 0.0
        %2010 = vmatpush1.msra.mxu0 0.0
        %2011 = vmatprep.subr.mxu0 0.0
        %2012 = vmatpush1.msra.mxu0 0.0
        %2013 = vmatprep.subr.mxu0 0.0
        %2014 = vmatpush1.msra.mxu0 0.0
        %2015 = vmatprep.subr.mxu0 0.0
        %2016 = vmatpush1.msra.mxu0 0.0
        %2017 = vmatprep.subr.mxu0 0.0
        %2018 = vmatpush1.msra.mxu0 0.0
        %2019 = vmatprep.subr.mxu0 0.0
        %2020 = vmatpush1.msra.mxu0 0.0
        %2021 = vmatprep.subr.mxu0 0.0
        %2022 = vmatpush1.msra.mxu0 0.0
        %2023 = vmatprep.subr.mxu0 0.0
        %2024 = vmatpush1.msra.mxu0 0.0
        %2025 = vmatprep.subr.mxu0 0.0
        %2026 = vmatpush1.msra.mxu0 0.0
        %2027 = vmatprep.subr.mxu0 0.0
        %2028 = vmatpush1.msra.mxu0 0.0
        %2029 = vmatprep.subr.mxu0 0.0
        %2030 = vmatpush1.msra.mxu0 0.0
        %2031 = vmatprep.subr.mxu0 0.0
        %2032 = vmatpush1.msra.mxu0 0.0
        %2033 = vmatprep.subr.mxu0 0.0
        %2034 = vmatpush1.msra.mxu0 0.0
        %2035 = vmatprep.subr.mxu0 0.0
        %2036 = vmatpush1.msra.mxu0 0.0
        %2037 = vmatprep.subr.mxu0 0.0
        %2038 = vmatpush1.msra.mxu0 0.0
        %2039 = vmatprep.subr.mxu0 0.0
        %2040 = vmatpush1.msra.mxu0 0.0
        %2041 = vmatprep.subr.mxu0 0.0
        %2042 = vmatpush1.msra.mxu0 0.0
        %2043 = vmatprep.subr.mxu0 0.0
        %2044 = vmatpush1.msra.mxu0 0.0
        %2045 = vmatprep.subr.mxu0 0.0
        %2046 = vmatpush1.msra.mxu0 0.0
        %2047 = vmatprep.subr.mxu0 0.0
        %2048 = vmatpush1.msra.mxu0 0.0
        %2049 = vmatprep.subr.mxu0 0.0
        %2050 = vmatpush1.msra.mxu0 0.0
        %2051 = vmatprep.subr.mxu0 0.0
        %2052 = vmatpush1.msra.mxu0 0.0
        %2053 = vmatprep.subr.mxu0 0.0
        %2054 = vmatpush1.msra.mxu0 0.0
        %2055 = vmatprep.subr.mxu0 0.0
        %2056 = vmatpush1.msra.mxu0 0.0
        %2057 = vmatprep.mubr.f32.mxu0 0.0
        %2058 = vmatmul.mubr.f32.gmra.mrb[0].mxu0 %v863
        %v2059 = vpop.f32.mrb[0].mxu0
        %v2060 = vadd.f32 0.0, %v2059
        %v2061 = vpop.f32.mrb[0].mxu0
        %2062 = vmatprep.mubr.f32.mxu0 0.0
        %2063 = vmatmul.mubr.f32.gmra.mrb[0].mxu0 %v866
        %v2064 = vpop.f32.mrb[0].mxu0
        %v2065 = vadd.f32 0.0, %v2064
        %v2066 = vpop.f32.mrb[0].mxu0
        %2067 = vdwg.mxu0
        %2068 = vmatprep.subr.mxu0 0.0
        %2069 = vmatpush1.msra.mxu0 %v824
        %2070 = vmatprep.subr.mxu0 0.0
        %2071 = vmatpush1.msra.mxu0 %v829
        %2072 = vmatprep.subr.mxu0 0.0
        %2073 = vmatpush1.msra.mxu0 0.0
        %2074 = vmatprep.subr.mxu0 0.0
        %2075 = vmatpush1.msra.mxu0 0.0
        %2076 = vmatprep.subr.mxu0 0.0
        %2077 = vmatpush1.msra.mxu0 0.0
        %2078 = vmatprep.subr.mxu0 0.0
        %2079 = vmatpush1.msra.mxu0 0.0
        %2080 = vmatprep.subr.mxu0 0.0
        %2081 = vmatpush1.msra.mxu0 0.0
        %2082 = vmatprep.subr.mxu0 0.0
        %2083 = vmatpush1.msra.mxu0 0.0
        %2084 = vmatprep.subr.mxu0 0.0
        %2085 = vmatpush1.msra.mxu0 0.0
        %2086 = vmatprep.subr.mxu0 0.0
        %2087 = vmatpush1.msra.mxu0 0.0
        %2088 = vmatprep.subr.mxu0 0.0
        %2089 = vmatpush1.msra.mxu0 0.0
        %2090 = vmatprep.subr.mxu0 0.0
        %2091 = vmatpush1.msra.mxu0 0.0
        %2092 = vmatprep.subr.mxu0 0.0
        %2093 = vmatpush1.msra.mxu0 0.0
        %2094 = vmatprep.subr.mxu0 0.0
        %2095 = vmatpush1.msra.mxu0 0.0
        %2096 = vmatprep.subr.mxu0 0.0
        %2097 = vmatpush1.msra.mxu0 0.0
        %2098 = vmatprep.subr.mxu0 0.0
        %2099 = vmatpush1.msra.mxu0 0.0
        %2100 = vmatprep.subr.mxu0 0.0
        %2101 = vmatpush1.msra.mxu0 0.0
        %2102 = vmatprep.subr.mxu0 0.0
        %2103 = vmatpush1.msra.mxu0 0.0
        %2104 = vmatprep.subr.mxu0 0.0
        %2105 = vmatpush1.msra.mxu0 0.0
        %2106 = vmatprep.subr.mxu0 0.0
        %2107 = vmatpush1.msra.mxu0 0.0
        %2108 = vmatprep.subr.mxu0 0.0
        %2109 = vmatpush1.msra.mxu0 0.0
        %2110 = vmatprep.subr.mxu0 0.0
        %2111 = vmatpush1.msra.mxu0 0.0
        %2112 = vmatprep.subr.mxu0 0.0
        %2113 = vmatpush1.msra.mxu0 0.0
        %2114 = vmatprep.subr.mxu0 0.0
        %2115 = vmatpush1.msra.mxu0 0.0
        %2116 = vmatprep.subr.mxu0 0.0
        %2117 = vmatpush1.msra.mxu0 0.0
        %2118 = vmatprep.subr.mxu0 0.0
        %2119 = vmatpush1.msra.mxu0 0.0
        %2120 = vmatprep.subr.mxu0 0.0
        %2121 = vmatpush1.msra.mxu0 0.0
        %2122 = vmatprep.subr.mxu0 0.0
        %2123 = vmatpush1.msra.mxu0 0.0
        %2124 = vmatprep.subr.mxu0 0.0
        %2125 = vmatpush1.msra.mxu0 0.0
        %2126 = vmatprep.subr.mxu0 0.0
        %2127 = vmatpush1.msra.mxu0 0.0
        %2128 = vmatprep.subr.mxu0 0.0
        %2129 = vmatpush1.msra.mxu0 0.0
        %2130 = vmatprep.subr.mxu0 0.0
        %2131 = vmatpush1.msra.mxu0 0.0
        %2132 = vmatprep.mubr.f32.mxu0 0.0
        %2133 = vmatmul.mubr.f32.gmra.mrb[0].mxu0 %v863
        %v2134 = vpop.f32.mrb[0].mxu0
        %v2135 = vadd.f32 0.0, %v2134
        %v2136 = vpop.f32.mrb[0].mxu0
        %2137 = vmatprep.mubr.f32.mxu0 0.0
        %2138 = vmatmul.mubr.f32.gmra.mrb[0].mxu0 %v866
        %v2139 = vpop.f32.mrb[0].mxu0
        %v2140 = vadd.f32 0.0, %v2139
        %v2141 = vpop.f32.mrb[0].mxu0
        %2142 = vdwg.mxu0
        %2143 = vmatprep.subr.mxu0 0.0
        %2144 = vmatpush1.msra.mxu0 %v834
        %2145 = vmatprep.subr.mxu0 0.0
        %2146 = vmatpush1.msra.mxu0 %v839
        %2147 = vmatprep.subr.mxu0 0.0
        %2148 = vmatpush1.msra.mxu0 0.0
        %2149 = vmatprep.subr.mxu0 0.0
        %2150 = vmatpush1.msra.mxu0 0.0
        %2151 = vmatprep.subr.mxu0 0.0
        %2152 = vmatpush1.msra.mxu0 0.0
        %2153 = vmatprep.subr.mxu0 0.0
        %2154 = vmatpush1.msra.mxu0 0.0
        %2155 = vmatprep.subr.mxu0 0.0
        %2156 = vmatpush1.msra.mxu0 0.0
        %2157 = vmatprep.subr.mxu0 0.0
        %2158 = vmatpush1.msra.mxu0 0.0
        %2159 = vmatprep.subr.mxu0 0.0
        %2160 = vmatpush1.msra.mxu0 0.0
        %2161 = vmatprep.subr.mxu0 0.0
        %2162 = vmatpush1.msra.mxu0 0.0
        %2163 = vmatprep.subr.mxu0 0.0
        %2164 = vmatpush1.msra.mxu0 0.0
        %2165 = vmatprep.subr.mxu0 0.0
        %2166 = vmatpush1.msra.mxu0 0.0
        %2167 = vmatprep.subr.mxu0 0.0
        %2168 = vmatpush1.msra.mxu0 0.0
        %2169 = vmatprep.subr.mxu0 0.0
        %2170 = vmatpush1.msra.mxu0 0.0
        %2171 = vmatprep.subr.mxu0 0.0
        %2172 = vmatpush1.msra.mxu0 0.0
        %2173 = vmatprep.subr.mxu0 0.0
        %2174 = vmatpush1.msra.mxu0 0.0
        %2175 = vmatprep.subr.mxu0 0.0
        %2176 = vmatpush1.msra.mxu0 0.0
        %2177 = vmatprep.subr.mxu0 0.0
        %2178 = vmatpush1.msra.mxu0 0.0
        %2179 = vmatprep.subr.mxu0 0.0
        %2180 = vmatpush1.msra.mxu0 0.0
        %2181 = vmatprep.subr.mxu0 0.0
        %2182 = vmatpush1.msra.mxu0 0.0
        %2183 = vmatprep.subr.mxu0 0.0
        %2184 = vmatpush1.msra.mxu0 0.0
        %2185 = vmatprep.subr.mxu0 0.0
        %2186 = vmatpush1.msra.mxu0 0.0
        %2187 = vmatprep.subr.mxu0 0.0
        %2188 = vmatpush1.msra.mxu0 0.0
        %2189 = vmatprep.subr.mxu0 0.0
        %2190 = vmatpush1.msra.mxu0 0.0
        %2191 = vmatprep.subr.mxu0 0.0
        %2192 = vmatpush1.msra.mxu0 0.0
        %2193 = vmatprep.subr.mxu0 0.0
        %2194 = vmatpush1.msra.mxu0 0.0
        %2195 = vmatprep.subr.mxu0 0.0
        %2196 = vmatpush1.msra.mxu0 0.0
        %2197 = vmatprep.subr.mxu0 0.0
        %2198 = vmatpush1.msra.mxu0 0.0
        %2199 = vmatprep.subr.mxu0 0.0
        %2200 = vmatpush1.msra.mxu0 0.0
        %2201 = vmatprep.subr.mxu0 0.0
        %2202 = vmatpush1.msra.mxu0 0.0
        %2203 = vmatprep.subr.mxu0 0.0
        %2204 = vmatpush1.msra.mxu0 0.0
        %2205 = vmatprep.subr.mxu0 0.0
        %2206 = vmatpush1.msra.mxu0 0.0
        %2207 = vmatprep.mubr.f32.mxu0 0.0
        %2208 = vmatmul.mubr.f32.gmra.mrb[0].mxu0 %v863
        %v2209 = vpop.f32.mrb[0].mxu0
        %v2210 = vadd.f32 0.0, %v2209
        %v2211 = vpop.f32.mrb[0].mxu0
        %2212 = vmatprep.mubr.f32.mxu0 0.0
        %2213 = vmatmul.mubr.f32.gmra.mrb[0].mxu0 %v866
        %v2214 = vpop.f32.mrb[0].mxu0
        %v2215 = vadd.f32 0.0, %v2214
        %v2216 = vpop.f32.mrb[0].mxu0
        %2217 = vdwg.mxu0
        %2218 = vmatprep.subr.mxu0 0.0
        %2219 = vmatpush1.msra.mxu0 %v844
        %2220 = vmatprep.subr.mxu0 0.0
        %2221 = vmatpush1.msra.mxu0 %v849
        %2222 = vmatprep.subr.mxu0 0.0
        %2223 = vmatpush1.msra.mxu0 0.0
        %2224 = vmatprep.subr.mxu0 0.0
        %2225 = vmatpush1.msra.mxu0 0.0
        %2226 = vmatprep.subr.mxu0 0.0
        %2227 = vmatpush1.msra.mxu0 0.0
        %2228 = vmatprep.subr.mxu0 0.0
        %2229 = vmatpush1.msra.mxu0 0.0
        %2230 = vmatprep.subr.mxu0 0.0
        %2231 = vmatpush1.msra.mxu0 0.0
        %2232 = vmatprep.subr.mxu0 0.0
        %2233 = vmatpush1.msra.mxu0 0.0
        %2234 = vmatprep.subr.mxu0 0.0
        %2235 = vmatpush1.msra.mxu0 0.0
        %2236 = vmatprep.subr.mxu0 0.0
        %2237 = vmatpush1.msra.mxu0 0.0
        %2238 = vmatprep.subr.mxu0 0.0
        %2239 = vmatpush1.msra.mxu0 0.0
        %2240 = vmatprep.subr.mxu0 0.0
        %2241 = vmatpush1.msra.mxu0 0.0
        %2242 = vmatprep.subr.mxu0 0.0
        %2243 = vmatpush1.msra.mxu0 0.0
        %2244 = vmatprep.subr.mxu0 0.0
        %2245 = vmatpush1.msra.mxu0 0.0
        %2246 = vmatprep.subr.mxu0 0.0
        %2247 = vmatpush1.msra.mxu0 0.0
        %2248 = vmatprep.subr.mxu0 0.0
        %2249 = vmatpush1.msra.mxu0 0.0
        %2250 = vmatprep.subr.mxu0 0.0
        %2251 = vmatpush1.msra.mxu0 0.0
        %2252 = vmatprep.subr.mxu0 0.0
        %2253 = vmatpush1.msra.mxu0 0.0
        %2254 = vmatprep.subr.mxu0 0.0
        %2255 = vmatpush1.msra.mxu0 0.0
        %2256 = vmatprep.subr.mxu0 0.0
        %2257 = vmatpush1.msra.mxu0 0.0
        %2258 = vmatprep.subr.mxu0 0.0
        %2259 = vmatpush1.msra.mxu0 0.0
        %2260 = vmatprep.subr.mxu0 0.0
        %2261 = vmatpush1.msra.mxu0 0.0
        %2262 = vmatprep.subr.mxu0 0.0
        %2263 = vmatpush1.msra.mxu0 0.0
        %2264 = vmatprep.subr.mxu0 0.0
        %2265 = vmatpush1.msra.mxu0 0.0
        %2266 = vmatprep.subr.mxu0 0.0
        %2267 = vmatpush1.msra.mxu0 0.0
        %2268 = vmatprep.subr.mxu0 0.0
        %2269 = vmatpush1.msra.mxu0 0.0
        %2270 = vmatprep.subr.mxu0 0.0
        %2271 = vmatpush1.msra.mxu0 0.0
        %2272 = vmatprep.subr.mxu0 0.0
        %2273 = vmatpush1.msra.mxu0 0.0
        %2274 = vmatprep.subr.mxu0 0.0
        %2275 = vmatpush1.msra.mxu0 0.0
        %2276 = vmatprep.subr.mxu0 0.0
        %2277 = vmatpush1.msra.mxu0 0.0
        %2278 = vmatprep.subr.mxu0 0.0
        %2279 = vmatpush1.msra.mxu0 0.0
        %2280 = vmatprep.subr.mxu0 0.0
        %2281 = vmatpush1.msra.mxu0 0.0
        %2282 = vmatprep.mubr.f32.mxu0 0.0
        %2283 = vmatmul.mubr.f32.gmra.mrb[0].mxu0 %v863
        %v2284 = vpop.f32.mrb[0].mxu0
        %v2285 = vadd.f32 0.0, %v2284
        %v2286 = vpop.f32.mrb[0].mxu0
        %2287 = vmatprep.mubr.f32.mxu0 0.0
        %2288 = vmatmul.mubr.f32.gmra.mrb[0].mxu0 %v866
        %v2289 = vpop.f32.mrb[0].mxu0
        %v2290 = vadd.f32 0.0, %v2289
        %v2291 = vpop.f32.mrb[0].mxu0
        %2292 = vdwg.mxu0
        %2293 = vmatprep.subr.mxu0 0.0
        %2294 = vmatpush1.msra.mxu0 %v854
        %2295 = vmatprep.subr.mxu0 0.0
        %2296 = vmatpush1.msra.mxu0 %v859
        %2297 = vmatprep.subr.mxu0 0.0
        %2298 = vmatpush1.msra.mxu0 0.0
        %2299 = vmatprep.subr.mxu0 0.0
        %2300 = vmatpush1.msra.mxu0 0.0
        %2301 = vmatprep.subr.mxu0 0.0
        %2302 = vmatpush1.msra.mxu0 0.0
        %2303 = vmatprep.subr.mxu0 0.0
        %2304 = vmatpush1.msra.mxu0 0.0
        %2305 = vmatprep.subr.mxu0 0.0
        %2306 = vmatpush1.msra.mxu0 0.0
        %2307 = vmatprep.subr.mxu0 0.0
        %2308 = vmatpush1.msra.mxu0 0.0
        %2309 = vmatprep.subr.mxu0 0.0
        %2310 = vmatpush1.msra.mxu0 0.0
        %2311 = vmatprep.subr.mxu0 0.0
        %2312 = vmatpush1.msra.mxu0 0.0
        %2313 = vmatprep.subr.mxu0 0.0
        %2314 = vmatpush1.msra.mxu0 0.0
        %2315 = vmatprep.subr.mxu0 0.0
        %2316 = vmatpush1.msra.mxu0 0.0
        %2317 = vmatprep.subr.mxu0 0.0
        %2318 = vmatpush1.msra.mxu0 0.0
        %2319 = vmatprep.subr.mxu0 0.0
        %2320 = vmatpush1.msra.mxu0 0.0
        %2321 = vmatprep.subr.mxu0 0.0
        %2322 = vmatpush1.msra.mxu0 0.0
        %2323 = vmatprep.subr.mxu0 0.0
        %2324 = vmatpush1.msra.mxu0 0.0
        %2325 = vmatprep.subr.mxu0 0.0
        %2326 = vmatpush1.msra.mxu0 0.0
        %2327 = vmatprep.subr.mxu0 0.0
        %2328 = vmatpush1.msra.mxu0 0.0
        %2329 = vmatprep.subr.mxu0 0.0
        %2330 = vmatpush1.msra.mxu0 0.0
        %2331 = vmatprep.subr.mxu0 0.0
        %2332 = vmatpush1.msra.mxu0 0.0
        %2333 = vmatprep.subr.mxu0 0.0
        %2334 = vmatpush1.msra.mxu0 0.0
        %2335 = vmatprep.subr.mxu0 0.0
        %2336 = vmatpush1.msra.mxu0 0.0
        %2337 = vmatprep.subr.mxu0 0.0
        %2338 = vmatpush1.msra.mxu0 0.0
        %2339 = vmatprep.subr.mxu0 0.0
        %2340 = vmatpush1.msra.mxu0 0.0
        %2341 = vmatprep.subr.mxu0 0.0
        %2342 = vmatpush1.msra.mxu0 0.0
        %2343 = vmatprep.subr.mxu0 0.0
        %2344 = vmatpush1.msra.mxu0 0.0
        %2345 = vmatprep.subr.mxu0 0.0
        %2346 = vmatpush1.msra.mxu0 0.0
        %2347 = vmatprep.subr.mxu0 0.0
        %2348 = vmatpush1.msra.mxu0 0.0
        %2349 = vmatprep.subr.mxu0 0.0
        %2350 = vmatpush1.msra.mxu0 0.0
        %2351 = vmatprep.subr.mxu0 0.0
        %2352 = vmatpush1.msra.mxu0 0.0
        %2353 = vmatprep.subr.mxu0 0.0
        %2354 = vmatpush1.msra.mxu0 0.0
        %2355 = vmatprep.subr.mxu0 0.0
        %2356 = vmatpush1.msra.mxu0 0.0
        %2357 = vmatprep.mubr.f32.mxu0 0.0
        %2358 = vmatmul.mubr.f32.gmra.mrb[0].mxu0 %v863
        %v2359 = vpop.f32.mrb[0].mxu0
        %v2360 = vadd.f32 0.0, %v2359
        %v2361 = vpop.f32.mrb[0].mxu0
        %2362 = vmatprep.mubr.f32.mxu0 0.0
        %2363 = vmatmul.mubr.f32.gmra.mrb[0].mxu0 %v866
        %v2364 = vpop.f32.mrb[0].mxu0
        %v2365 = vadd.f32 0.0, %v2364
        %v2366 = vpop.f32.mrb[0].mxu0
        %2367 = vdwg.mxu0
        %v2368 = vmul.f32 %v935, %v935
        %v2369 = vmul.f32 %v940, %v940
        %v2370 = vmul.f32 %v1010, %v1010
        %v2371 = vmul.f32 %v1015, %v1015
        %v2372 = vmul.f32 %v1085, %v1085
        %v2373 = vmul.f32 %v1090, %v1090
        %v2374 = vmul.f32 %v1160, %v1160
        %v2375 = vmul.f32 %v1165, %v1165
        %v2376 = vmul.f32 %v1235, %v1235
        %v2377 = vmul.f32 %v1240, %v1240
        %v2378 = vmul.f32 %v1310, %v1310
        %v2379 = vmul.f32 %v1315, %v1315
        %v2380 = vmul.f32 %v1385, %v1385
        %v2381 = vmul.f32 %v1390, %v1390
        %v2382 = vmul.f32 %v1460, %v1460
        %v2383 = vmul.f32 %v1465, %v1465
        %v2384 = vmul.f32 %v935, %v1235
        %v2385 = vmul.f32 %v940, %v1240
        %v2386 = vmul.f32 %v1010, %v1310
        %v2387 = vmul.f32 %v1015, %v1315
        %v2388 = vmul.f32 %v1085, %v1385
        %v2389 = vmul.f32 %v1090, %v1390
        %v2390 = vmul.f32 %v1160, %v1460
        %v2391 = vmul.f32 %v1165, %v1465
        %v2392 = vsub.f32 %v1535, %v2368
        %v2393 = vsub.f32 %v1540, %v2369
        %v2394 = vsub.f32 %v1610, %v2370
        %v2395 = vsub.f32 %v1615, %v2371
        %v2396 = vsub.f32 %v1685, %v2372
        %v2397 = vsub.f32 %v1690, %v2373
        %v2398 = vsub.f32 %v1760, %v2374
        %v2399 = vsub.f32 %v1765, %v2375
        %v2400 = vsub.f32 %v1835, %v2376
        %v2401 = vsub.f32 %v1840, %v2377
        %v2402 = vsub.f32 %v1910, %v2378
        %v2403 = vsub.f32 %v1915, %v2379
        %v2404 = vsub.f32 %v1985, %v2380
        %v2405 = vsub.f32 %v1990, %v2381
        %v2406 = vsub.f32 %v2060, %v2382
        %v2407 = vsub.f32 %v2065, %v2383
        %v2408 = vsub.f32 %v2135, %v2384
        %v2409 = vsub.f32 %v2140, %v2385
        %v2410 = vsub.f32 %v2210, %v2386
        %v2411 = vsub.f32 %v2215, %v2387
        %v2412 = vsub.f32 %v2285, %v2388
        %v2413 = vsub.f32 %v2290, %v2389
        %v2414 = vsub.f32 %v2360, %v2390
        %v2415 = vsub.f32 %v2365, %v2391
        %v2416 = vmul.f32 %v2384, 2.0
        %v2417 = vmul.f32 %v2385, 2.0
        %v2418 = vmul.f32 %v2386, 2.0
        %v2419 = vmul.f32 %v2387, 2.0
        %v2420 = vmul.f32 %v2388, 2.0
        %v2421 = vmul.f32 %v2389, 2.0
        %v2422 = vmul.f32 %v2390, 2.0
        %v2423 = vmul.f32 %v2391, 2.0
        %v2424 = vadd.f32 %v2416, 0.0001
        %v2425 = vadd.f32 %v2417, 0.0001
        %v2426 = vadd.f32 %v2418, 0.0001
        %v2427 = vadd.f32 %v2419, 0.0001
        %v2428 = vadd.f32 %v2420, 0.0001
        %v2429 = vadd.f32 %v2421, 0.0001
        %v2430 = vadd.f32 %v2422, 0.0001
        %v2431 = vadd.f32 %v2423, 0.0001
        %v2432 = vmul.f32 %v2408, 2.0
        %v2433 = vmul.f32 %v2409, 2.0
        %v2434 = vmul.f32 %v2410, 2.0
        %v2435 = vmul.f32 %v2411, 2.0
        %v2436 = vmul.f32 %v2412, 2.0
        %v2437 = vmul.f32 %v2413, 2.0
        %v2438 = vmul.f32 %v2414, 2.0
        %v2439 = vmul.f32 %v2415, 2.0
        %v2440 = vadd.f32 %v2432, 0.0009
        %v2441 = vadd.f32 %v2433, 0.0009
        %v2442 = vadd.f32 %v2434, 0.0009
        %v2443 = vadd.f32 %v2435, 0.0009
        %v2444 = vadd.f32 %v2436, 0.0009
        %v2445 = vadd.f32 %v2437, 0.0009
        %v2446 = vadd.f32 %v2438, 0.0009
        %v2447 = vadd.f32 %v2439, 0.0009
        %v2448 = vmul.f32 %v2424, %v2440
        %v2449 = vmul.f32 %v2425, %v2441
        %v2450 = vmul.f32 %v2426, %v2442
        %v2451 = vmul.f32 %v2427, %v2443
        %v2452 = vmul.f32 %v2428, %v2444
        %v2453 = vmul.f32 %v2429, %v2445
        %v2454 = vmul.f32 %v2430, %v2446
        %v2455 = vmul.f32 %v2431, %v2447
        %v2456 = vadd.f32 %v2368, %v2376
        %v2457 = vadd.f32 %v2369, %v2377
        %v2458 = vadd.f32 %v2370, %v2378
        %v2459 = vadd.f32 %v2371, %v2379
        %v2460 = vadd.f32 %v2372, %v2380
        %v2461 = vadd.f32 %v2373, %v2381
        %v2462 = vadd.f32 %v2374, %v2382
        %v2463 = vadd.f32 %v2375, %v2383
        %v2464 = vadd.f32 %v2456, 0.0001
        %v2465 = vadd.f32 %v2457, 0.0001
        %v2466 = vadd.f32 %v2458, 0.0001
        %v2467 = vadd.f32 %v2459, 0.0001
        %v2468 = vadd.f32 %v2460, 0.0001
        %v2469 = vadd.f32 %v2461, 0.0001
        %v2470 = vadd.f32 %v2462, 0.0001
        %v2471 = vadd.f32 %v2463, 0.0001
        %v2472 = vadd.f32 %v2392, %v2400
        %v2473 = vadd.f32 %v2393, %v2401
        %v2474 = vadd.f32 %v2394, %v2402
        %v2475 = vadd.f32 %v2395, %v2403
        %v2476 = vadd.f32 %v2396, %v2404
        %v2477 = vadd.f32 %v2397, %v2405
        %v2478 = vadd.f32 %v2398, %v2406
        %v2479 = vadd.f32 %v2399, %v2407
        %v2480 = vadd.f32 %v2472, 0.0009
        %v2481 = vadd.f32 %v2473, 0.0009
        %v2482 = vadd.f32 %v2474, 0.0009
        %v2483 = vadd.f32 %v2475, 0.0009
        %v2484 = vadd.f32 %v2476, 0.0009
        %v2485 = vadd.f32 %v2477, 0.0009
        %v2486 = vadd.f32 %v2478, 0.0009
        %v2487 = vadd.f32 %v2479, 0.0009
        %v2488 = vmul.f32 %v2464, %v2480
        %v2489 = vmul.f32 %v2465, %v2481
        %v2490 = vmul.f32 %v2466, %v2482
        %v2491 = vmul.f32 %v2467, %v2483
        %v2492 = vmul.f32 %v2468, %v2484
        %v2493 = vmul.f32 %v2469, %v2485
        %v2494 = vmul.f32 %v2470, %v2486
        %v2495 = vmul.f32 %v2471, %v2487
        %v2496 = vrcp.pop %v2488
        %v2497 = vmul.f32 %v2448, %v2496
        %v2498 = vrcp.pop %v2489
        %v2499 = vmul.f32 %v2449, %v2498
        %v2500 = vrcp.pop %v2490
        %v2501 = vmul.f32 %v2450, %v2500
        %v2502 = vrcp.pop %v2491
        %v2503 = vmul.f32 %v2451, %v2502
        %v2504 = vrcp.pop %v2492
        %v2505 = vmul.f32 %v2452, %v2504
        %v2506 = vrcp.pop %v2493
        %v2507 = vmul.f32 %v2453, %v2506
        %v2508 = vrcp.pop %v2494
        %v2509 = vmul.f32 %v2454, %v2508
        %v2510 = vrcp.pop %v2495
        %v2511 = vmul.f32 %v2455, %v2510
        %2512 = vst.msk [vmem:[%s396] sm:$0xff] %vm476, %v935
        %2513 = vst.msk [vmem:[%s396 + $0x8] sm:$0xff] %vm476, %v940
        %2514 = vst.msk [vmem:[%s396 + $0x10] sm:$0xff] %vm476, %v1010
        %2515 = vst.msk [vmem:[%s396 + $0x18] sm:$0xff] %vm476, %v1015
        %2516 = vst.msk [vmem:[%s396 + $0x20] sm:$0xff] %vm476, %v1085
        %2517 = vst.msk [vmem:[%s396 + $0x28] sm:$0xff] %vm476, %v1090
        %2518 = vst.msk [vmem:[%s396 + $0x30] sm:$0xff] %vm476, %v1160
        %2519 = vst.msk [vmem:[%s396 + $0x38] sm:$0xff] %vm476, %v1165
        %2520 = vst.msk [vmem:[%s403] sm:$0xff] %vm476, %v1235
        %2521 = vst.msk [vmem:[%s403 + $0x8] sm:$0xff] %vm476, %v1240
        %2522 = vst.msk [vmem:[%s403 + $0x10] sm:$0xff] %vm476, %v1310
        %2523 = vst.msk [vmem:[%s403 + $0x18] sm:$0xff] %vm476, %v1315
        %2524 = vst.msk [vmem:[%s403 + $0x20] sm:$0xff] %vm476, %v1385
        %2525 = vst.msk [vmem:[%s403 + $0x28] sm:$0xff] %vm476, %v1390
        %2526 = vst.msk [vmem:[%s403 + $0x30] sm:$0xff] %vm476, %v1460
        %2527 = vst.msk [vmem:[%s403 + $0x38] sm:$0xff] %vm476, %v1465
        %2528 = vst.msk [vmem:[%s410] sm:$0xff] %vm476, %v2392
        %2529 = vst.msk [vmem:[%s410 + $0x8] sm:$0xff] %vm476, %v2393
        %2530 = vst.msk [vmem:[%s410 + $0x10] sm:$0xff] %vm476, %v2394
        %2531 = vst.msk [vmem:[%s410 + $0x18] sm:$0xff] %vm476, %v2395
        %2532 = vst.msk [vmem:[%s410 + $0x20] sm:$0xff] %vm476, %v2396
        %2533 = vst.msk [vmem:[%s410 + $0x28] sm:$0xff] %vm476, %v2397
        %2534 = vst.msk [vmem:[%s410 + $0x30] sm:$0xff] %vm476, %v2398
        %2535 = vst.msk [vmem:[%s410 + $0x38] sm:$0xff] %vm476, %v2399
        %2536 = vst.msk [vmem:[%s417] sm:$0xff] %vm476, %v2400
        %2537 = vst.msk [vmem:[%s417 + $0x8] sm:$0xff] %vm476, %v2401
        %2538 = vst.msk [vmem:[%s417 + $0x10] sm:$0xff] %vm476, %v2402
        %2539 = vst.msk [vmem:[%s417 + $0x18] sm:$0xff] %vm476, %v2403
        %2540 = vst.msk [vmem:[%s417 + $0x20] sm:$0xff] %vm476, %v2404
        %2541 = vst.msk [vmem:[%s417 + $0x28] sm:$0xff] %vm476, %v2405
        %2542 = vst.msk [vmem:[%s417 + $0x30] sm:$0xff] %vm476, %v2406
        %2543 = vst.msk [vmem:[%s417 + $0x38] sm:$0xff] %vm476, %v2407
        %2544 = vst.msk [vmem:[%s424] sm:$0xff] %vm476, %v2497
        %2545 = vst.msk [vmem:[%s424 + $0x8] sm:$0xff] %vm476, %v2499
        %2546 = vst.msk [vmem:[%s424 + $0x10] sm:$0xff] %vm476, %v2501
        %2547 = vst.msk [vmem:[%s424 + $0x18] sm:$0xff] %vm476, %v2503
        %2548 = vst.msk [vmem:[%s424 + $0x20] sm:$0xff] %vm476, %v2505
        %2549 = vst.msk [vmem:[%s424 + $0x28] sm:$0xff] %vm476, %v2507
        %2550 = vst.msk [vmem:[%s424 + $0x30] sm:$0xff] %vm476, %v2509
        %2551 = vst.msk [vmem:[%s424 + $0x38] sm:$0xff] %vm476, %v2511
        %s2552 = sand.u32 %s133, 1
        %s2553 = scalar_lea.sflag [#allocation4], %s2552
        %s2554 = sand.u32 %s133, 1
        %s2555 = smul.addr %s2554, 64
        %s2556 = scalar_lea.vmem [#allocation9], %s2555
        %s2557 = sand.u32 %s31, 1
        %s2558 = scalar_lea.sflag [#allocation11], %s2557
        %s2559 = sand.u32 %s159, 1
        %s2560 = smul.addr %s2559, 64
        %s2561 = scalar_lea.vmem [#allocation10], %s2560
        %s2562 = sand.u32 %s31, 1
        %s2563 = scalar_lea.sflag [#allocation11], %s2562
        %s2564 = sand.u32 %s185, 1
        %s2565 = smul.addr %s2564, 64
        %s2566 = scalar_lea.vmem [#allocation12], %s2565
        %s2567 = sand.u32 %s31, 1
        %s2568 = scalar_lea.sflag [#allocation14], %s2567
        %s2569 = sand.u32 %s211, 1
        %s2570 = smul.addr %s2569, 64
        %s2571 = scalar_lea.vmem [#allocation13], %s2570
        %s2572 = sand.u32 %s31, 1
        %s2573 = scalar_lea.sflag [#allocation14], %s2572
        %s2574 = sand.u32 %s237, 1
        %s2575 = smul.addr %s2574, 64
        %s2576 = scalar_lea.vmem [#allocation15], %s2575
        // Predicated region
        $region53: #{tpu_custom_call.1} parent=35 // pred_check
          %p2577 = pneg %p143
        $region54: #{tpu_custom_call.1} parent=35 // pred_check_branch
          %2579 = sbr.rel (%p2577) target = $region56
        $region55: #{tpu_custom_call.1} parent=35 // pred_region
          %s2580 = smul.u32 4, %s31
          %s2582 = ssub.s32 1024, 1024
          %2583 = vsyncadd %s2553, %s2582
          %s2584 = smul.addr %s2580, 2
          %s2585 = smul.addr %s2584, 128
          %s2586 = scalar_lea.hbm %s4, %s2585
          %s2587 = sshll.u32 %s2556, 4
          %s2588 = int_to_ptr.vmem [resolvable:$true] %s2587
          %2593 = dma.vmem_to_hbm [thread:$0]  %s2588, 1024, %s2586, %s2553, 128, 128, 8
        $region56: #{tpu_custom_call.1} parent=35 // pred_fallthru
          _
        // Predicated region
        $region57: #{tpu_custom_call.1} parent=35 // pred_check
          %p2594 = pneg %p169
        $region58: #{tpu_custom_call.1} parent=35 // pred_check_branch
          %2596 = sbr.rel (%p2594) target = $region60
        $region59: #{tpu_custom_call.1} parent=35 // pred_region
          %s2597 = smul.u32 4, %s31
          %s2599 = ssub.s32 1024, 1024
          %2600 = vsyncadd %s2558, %s2599
          %s2601 = smul.addr %s2597, 2
          %s2602 = smul.addr %s2601, 128
          %s2603 = scalar_lea.hbm %s5, %s2602
          %s2604 = sshll.u32 %s2561, 4
          %s2605 = int_to_ptr.vmem [resolvable:$true] %s2604
          %2610 = dma.vmem_to_hbm [thread:$0]  %s2605, 1024, %s2603, %s2558, 128, 128, 8
        $region60: #{tpu_custom_call.1} parent=35 // pred_fallthru
          _
        // Predicated region
        $region61: #{tpu_custom_call.1} parent=35 // pred_check
          %p2611 = pneg %p195
        $region62: #{tpu_custom_call.1} parent=35 // pred_check_branch
          %2613 = sbr.rel (%p2611) target = $region64
        $region63: #{tpu_custom_call.1} parent=35 // pred_region
          %s2614 = smul.u32 4, %s31
          %s2616 = ssub.s32 1024, 1024
          %2617 = vsyncadd %s2563, %s2616
          %s2618 = smul.addr %s2614, 2
          %s2619 = smul.addr %s2618, 128
          %s2620 = scalar_lea.hbm %s6, %s2619
          %s2621 = sshll.u32 %s2566, 4
          %s2622 = int_to_ptr.vmem [resolvable:$true] %s2621
          %2627 = dma.vmem_to_hbm [thread:$0]  %s2622, 1024, %s2620, %s2563, 128, 128, 8
        $region64: #{tpu_custom_call.1} parent=35 // pred_fallthru
          _
        // Predicated region
        $region65: #{tpu_custom_call.1} parent=35 // pred_check
          %p2628 = pneg %p221
        $region66: #{tpu_custom_call.1} parent=35 // pred_check_branch
          %2630 = sbr.rel (%p2628) target = $region68
        $region67: #{tpu_custom_call.1} parent=35 // pred_region
          %s2631 = smul.u32 4, %s31
          %s2633 = ssub.s32 1024, 1024
          %2634 = vsyncadd %s2568, %s2633
          %s2635 = smul.addr %s2631, 2
          %s2636 = smul.addr %s2635, 128
          %s2637 = scalar_lea.hbm %s7, %s2636
          %s2638 = sshll.u32 %s2571, 4
          %s2639 = int_to_ptr.vmem [resolvable:$true] %s2638
          %2644 = dma.vmem_to_hbm [thread:$0]  %s2639, 1024, %s2637, %s2568, 128, 128, 8
        $region68: #{tpu_custom_call.1} parent=35 // pred_fallthru
          _
        // Predicated region
        $region69: #{tpu_custom_call.1} parent=35 // pred_check
          %p2645 = pneg %p247
        $region70: #{tpu_custom_call.1} parent=35 // pred_check_branch
          %2647 = sbr.rel (%p2645) target = $region72
        $region71: #{tpu_custom_call.1} parent=35 // pred_region
          %s2648 = smul.u32 4, %s31
          %s2650 = ssub.s32 1024, 1024
          %2651 = vsyncadd %s2573, %s2650
          %s2652 = smul.addr %s2648, 2
          %s2653 = smul.addr %s2652, 128
          %s2654 = scalar_lea.hbm %s8, %s2653
          %s2655 = sshll.u32 %s2576, 4
          %s2656 = int_to_ptr.vmem [resolvable:$true] %s2655
          %2661 = dma.vmem_to_hbm [thread:$0]  %s2656, 1024, %s2654, %s2573, 128, 128, 8
        $region72: #{tpu_custom_call.1} parent=35 // pred_fallthru
          _
      $region36: #{tpu_custom_call.1} parent=5 // pred_fallthru
        _
      %p2662 = scmp.le.s32.totalorder 2, %s26
      // Predicated region
      $region73: #{tpu_custom_call.1} parent=5 // pred_check
        %p2663 = pneg %p2662
      $region74: #{tpu_custom_call.1} parent=5 // pred_check_branch
        %2665 = sbr.rel (%p2663) target = $region76
      $region75: #{tpu_custom_call.1} parent=5 // pred_region
        %s2666 = ssub.s32 %s26, 2
        // Predicated region
        $region77: #{tpu_custom_call.1} parent=75 // pred_check
          %p2667 = pneg %p149
        $region78: #{tpu_custom_call.1} parent=75 // pred_check_branch
          %2669 = sbr.rel (%p2667) target = $region80
        $region79: #{tpu_custom_call.1} parent=75 // pred_region
          %s2670 = sand.u32 %s134, 1
          %s2671 = scalar_lea.sflag [#allocation4], %s2670
          %s2672 = sand.u32 %s134, 1
          %s2673 = smul.addr %s2672, 64
          %s2674 = scalar_lea.vmem [#allocation9], %s2673
          %2675 = dma.done %s2671, 1024
        $region80: #{tpu_custom_call.1} parent=75 // pred_fallthru
          _
        // Predicated region
        $region81: #{tpu_custom_call.1} parent=75 // pred_check
          %p2676 = pneg %p175
        $region82: #{tpu_custom_call.1} parent=75 // pred_check_branch
          %2678 = sbr.rel (%p2676) target = $region84
        $region83: #{tpu_custom_call.1} parent=75 // pred_region
          %s2679 = sand.u32 %s32, 1
          %s2680 = scalar_lea.sflag [#allocation11], %s2679
          %s2681 = sand.u32 %s160, 1
          %s2682 = smul.addr %s2681, 64
          %s2683 = scalar_lea.vmem [#allocation10], %s2682
          %2684 = dma.done %s2680, 1024
        $region84: #{tpu_custom_call.1} parent=75 // pred_fallthru
          _
        // Predicated region
        $region85: #{tpu_custom_call.1} parent=75 // pred_check
          %p2685 = pneg %p201
        $region86: #{tpu_custom_call.1} parent=75 // pred_check_branch
          %2687 = sbr.rel (%p2685) target = $region88
        $region87: #{tpu_custom_call.1} parent=75 // pred_region
          %s2688 = sand.u32 %s32, 1
          %s2689 = scalar_lea.sflag [#allocation11], %s2688
          %s2690 = sand.u32 %s186, 1
          %s2691 = smul.addr %s2690, 64
          %s2692 = scalar_lea.vmem [#allocation12], %s2691
          %2693 = dma.done %s2689, 1024
        $region88: #{tpu_custom_call.1} parent=75 // pred_fallthru
          _
        // Predicated region
        $region89: #{tpu_custom_call.1} parent=75 // pred_check
          %p2694 = pneg %p227
        $region90: #{tpu_custom_call.1} parent=75 // pred_check_branch
          %2696 = sbr.rel (%p2694) target = $region92
        $region91: #{tpu_custom_call.1} parent=75 // pred_region
          %s2697 = sand.u32 %s32, 1
          %s2698 = scalar_lea.sflag [#allocation14], %s2697
          %s2699 = sand.u32 %s212, 1
          %s2700 = smul.addr %s2699, 64
          %s2701 = scalar_lea.vmem [#allocation13], %s2700
          %2702 = dma.done %s2698, 1024
        $region92: #{tpu_custom_call.1} parent=75 // pred_fallthru
          _
        // Predicated region
        $region93: #{tpu_custom_call.1} parent=75 // pred_check
          %p2703 = pneg %p253
        $region94: #{tpu_custom_call.1} parent=75 // pred_check_branch
          %2705 = sbr.rel (%p2703) target = $region96
        $region95: #{tpu_custom_call.1} parent=75 // pred_region
          %s2706 = sand.u32 %s32, 1
          %s2707 = scalar_lea.sflag [#allocation14], %s2706
          %s2708 = sand.u32 %s238, 1
          %s2709 = smul.addr %s2708, 64
          %s2710 = scalar_lea.vmem [#allocation15], %s2709
          %2711 = dma.done %s2707, 1024
        $region96: #{tpu_custom_call.1} parent=75 // pred_fallthru
          _
      $region76: #{tpu_custom_call.1} parent=5 // pred_fallthru
        _
    $region6: #{tpu_custom_call.1} parent=1 // loop_footer
      %s30 = sadd.s32 1, %s26
    $region7: #{tpu_custom_call.1} parent=1 // loop_footer_branch
      %25 = sbr.rel target = $region3
    $region8: #{tpu_custom_call.1} parent=1 // loop_exit
      _
    %2712 = vsyncpa [#allocation3], 1
    %s2713 = scalar_lea.sflag [#allocation3], 1
    %2714 = vsyncpa %s2713, 1
    %2715 = vsyncpa [#allocation6], 1
    %2716 = vsyncpa [#allocation4], 1
    %s2717 = scalar_lea.sflag [#allocation4], 1
    %2718 = vsyncpa %s2717, 1
    %2719 = vsyncpa [#allocation11], 1
    %s2720 = scalar_lea.sflag [#allocation11], 1
    %2721 = vsyncpa %s2720, 1
    %2722 = vsyncpa [#allocation14], 1
    %s2723 = scalar_lea.sflag [#allocation14], 1
    %2724 = vsyncpa %s2723, 1

</llo_original>
